<compile_context>
chip_gen: v6e
topology: v6e:2x2x1
jax: 0.10.0
libtpu: 0.0.40
codegen_flags: <defaults>
</compile_context>

<pallas_src>
import jax
import jax.numpy as jnp
from jax import lax
from jax.experimental import pallas as pl
from jax.experimental.pallas import tpu as pltpu


def _pick_time_chunk(T, twoB, max_chunk=32, max_rows=256):
    """Largest divisor Tc of T with Tc <= max_chunk, Tc*twoB <= max_rows and a
    sublane-friendly block (Tc*twoB % 8 == 0 unless the block is the full array)."""
    best = None
    for tc in range(1, T + 1):
        if T % tc:
            continue
        if tc > max_chunk or tc * twoB > max_rows:
            continue
        if tc != T and (tc * twoB) % 8 != 0:
            continue
        best = tc
    if best is None:
        best = T  # single chunk: block equals full array -> always a legal block
    return best


def _make_kernel(num_layers, B, Tc, H, fuse_layers, hoist_weights):
    twoB = 2 * B

    def kernel(*refs):
        idx = 0
        x_ref = refs[idx]; idx += 1            # (Tc*2B, D) bf16 input chunk
        wih0T_ref = refs[idx]; idx += 1        # (D, H)  bf16
        whh0T_ref = refs[idx]; idx += 1        # (H, H)  bf16
        b0_ref = refs[idx]; idx += 1           # (1, H)  f32 (b_ih + b_hh folded)
        layer_refs = []                        # layers 1..L-1
        for _ in range(num_layers - 1):
            if fuse_layers:
                layer_refs.append((refs[idx], refs[idx + 1]))            # (2H,H), (1,H)
                idx += 2
            else:
                layer_refs.append((refs[idx], refs[idx + 1], refs[idx + 2]))
                idx += 3
        wfcf_ref = refs[idx]; idx += 1         # (H, out) bf16
        wfcr_ref = refs[idx]; idx += 1         # (H, out) bf16
        bfc_ref = refs[idx]; idx += 1          # (1, out) f32
        out_ref = refs[idx]; idx += 1          # (B, out) f32
        hs_ref = refs[idx]                     # (L, 2B, H) f32 scratch (persists)

        i = pl.program_id(0)

        @pl.when(i == 0)
        def _():
            hs_ref[...] = jnp.zeros_like(hs_ref)

        # Layer-0 input projection for the whole chunk: one big matmul, bias folded.
        prein = (jnp.dot(x_ref[...], wih0T_ref[...],
                         preferred_element_type=jnp.float32)
                 + b0_ref[...])                                   # (Tc*2B, H) f32

        # Weight access: hoist into vregs only when they comfortably fit.
        if hoist_weights:
            whh0T_v = whh0T_ref[...]
            lw = [tuple(r[...] for r in lr[:-1]) for lr in layer_refs]
            get_whh0T = lambda: whh0T_v
            get_lw = lambda j, k: lw[j][k]
        else:
            get_whh0T = lambda: whh0T_ref[...]
            get_lw = lambda j, k: layer_refs[j][k][...]

        # Hoist per-layer bias broadcast out of the time loop (no CSE in JAX).
        bias_full = [jnp.broadcast_to(lr[-1][...], (twoB, H)) for lr in layer_refs]

        # Hidden-state carry (f32), [forward rows ; reverse rows] stacked.
        hs = [hs_ref[j] for j in range(num_layers)]               # each (2B, H)

        # Statically unrolled chunk loop: grid boundary bounds live ranges and the
        # unroll exposes the layer/time wavefront (overlapping MXU/EUP latency).
        for tt in range(Tc):
            xin = lax.slice_in_dim(prein, tt * twoB, (tt + 1) * twoB, axis=0)
            h0 = jnp.tanh(
                xin + jnp.dot(hs[0].astype(jnp.bfloat16), get_whh0T(),
                              preferred_element_type=jnp.float32))
            new_hs = [h0]
            prev = h0
            for j in range(num_layers - 1):
                if fuse_layers:
                    lhs = jnp.concatenate([prev, hs[j + 1]], axis=1).astype(jnp.bfloat16)
                    z = (jnp.dot(lhs, get_lw(j, 0),
                                 preferred_element_type=jnp.float32)
                         + bias_full[j])
                else:
                    z = (jnp.dot(prev.astype(jnp.bfloat16), get_lw(j, 0),
                                 preferred_element_type=jnp.float32)
                         + jnp.dot(hs[j + 1].astype(jnp.bfloat16), get_lw(j, 1),
                                   preferred_element_type=jnp.float32)
                         + bias_full[j])
                hj = jnp.tanh(z)
                new_hs.append(hj)
                prev = hj
            hs = new_hs

        # Write the carry back for the next chunk.
        for j in range(num_layers):
            hs_ref[j] = hs[j]

        @pl.when(i == pl.num_programs(0) - 1)
        def _():
            h_top = hs[-1]                               # (2B, H) f32
            hf = h_top[:B].astype(jnp.bfloat16)          # forward rows
            hr = h_top[B:].astype(jnp.bfloat16)          # reverse rows
            out_ref[...] = (
                jnp.dot(hf, wfcf_ref[...], preferred_element_type=jnp.float32)
                + jnp.dot(hr, wfcr_ref[...], preferred_element_type=jnp.float32)
                + bfc_ref[...])

    return kernel


def bidirectional_rnn(x, params):
    """x: (B, T, D_in) float32. Returns (B, out_size) float32."""
    B, T, D_in = x.shape
    layers = params["layers"]
    num_layers = len(layers)
    H = layers[0]["w_hh"].shape[0]
    out_size = params["fc_w"].shape[0]
    twoB = 2 * B

    wdt = jnp.bfloat16                       # native MXU input dtype (f32 accumulate)
    fuse_layers = (H % 128 == 0)             # lane-axis concat is only free then
    rec_w_bytes = H * H * 2 * (1 + 2 * (num_layers - 1))
    hoist_weights = rec_w_bytes <= 96 * 1024   # leave vreg room for the unrolled schedule

    # --- wrapper-side layout plumbing (done once, plain XLA) ---------------
    x_tm = jnp.transpose(x, (1, 0, 2))                       # (T, B, D)
    rev_idx = (T - jnp.arange(T)) % T                        # reproduces x[:, -t]
    x_rev = x_tm[rev_idx]                                    # (T, B, D)
    x_stack = jnp.concatenate([x_tm, x_rev], axis=1)         # (T, 2B, D)
    x_flat = x_stack.reshape(T * twoB, D_in).astype(wdt)     # (T*2B, D) bf16

    Tc = _pick_time_chunk(T, twoB)
    grid = (T // Tc,)

    l0 = layers[0]
    wih0T = l0["w_ih"].T.astype(wdt)                         # (D, H)
    whh0T = l0["w_hh"].T.astype(wdt)                         # (H, H)
    b0 = (l0["b_ih"] + l0["b_hh"]).reshape(1, H).astype(jnp.float32)

    inputs = [x_flat, wih0T, whh0T, b0]
    in_specs = [
        pl.BlockSpec((Tc * twoB, D_in), lambda i: (i, 0)),   # streamed over time
        pl.BlockSpec(wih0T.shape, lambda i: (0, 0)),         # weights stay resident
        pl.BlockSpec(whh0T.shape, lambda i: (0, 0)),
        pl.BlockSpec(b0.shape, lambda i: (0, 0)),
    ]

    for lp in layers[1:]:
        b = (lp["b_ih"] + lp["b_hh"]).reshape(1, H).astype(jnp.float32)
        if fuse_layers:
            w = jnp.concatenate([lp["w_ih"].T, lp["w_hh"].T], axis=0).astype(wdt)  # (2H, H)
            arrs = (w, b)
        else:
            arrs = (lp["w_ih"].T.astype(wdt), lp["w_hh"].T.astype(wdt), b)
        for arr in arrs:
            inputs.append(arr)
            in_specs.append(pl.BlockSpec(arr.shape, lambda i: (0, 0)))

    # fc weight split into forward / reverse halves -> no lane-axis concat in-kernel.
    wfc_f = params["fc_w"][:, :H].T.astype(wdt)              # (H, out)
    wfc_r = params["fc_w"][:, H:].T.astype(wdt)              # (H, out)
    bfc = params["fc_b"].reshape(1, out_size).astype(jnp.float32)
    for arr in (wfc_f, wfc_r, bfc):
        inputs.append(arr)
        in_specs.append(pl.BlockSpec(arr.shape, lambda i: (0, 0)))

    kernel = _make_kernel(num_layers, B, Tc, H, fuse_layers, hoist_weights)

    return pl.pallas_call(
        kernel,
        out_shape=jax.ShapeDtypeStruct((B, out_size), jnp.float32),
        grid_spec=pltpu.PrefetchScalarGridSpec(
            num_scalar_prefetch=0,
            grid=grid,
            in_specs=in_specs,
            out_specs=pl.BlockSpec((B, out_size), lambda i: (0, 0)),
            scratch_shapes=[pltpu.VMEM((num_layers, twoB, H), jnp.float32)]),
        compiler_params=pltpu.CompilerParams(
            dimension_semantics=("arbitrary",),     # sequential hidden-state carry
            vmem_limit_bytes=32 * 1024 * 1024),
    )(*inputs)


def ref_forward(x, params):
    """Pure-JAX f32 reference with the exact PyTorch forward semantics."""
    B, T, _ = x.shape
    layers = params["layers"]
    L = len(layers)
    H = layers[0]["w_hh"].shape[0]
    hf = [jnp.zeros((B, H), jnp.float32) for _ in range(L)]
    hr = [jnp.zeros((B, H), jnp.float32) for _ in range(L)]
    for step in range(T):
        xf = x[:, step]
        xr = x[:, (-step) % T]
        for j, lp in enumerate(layers):
            hf[j] = jnp.tanh(xf @ lp["w_ih"].T + lp["b_ih"]
                             + hf[j] @ lp["w_hh"].T + lp["b_hh"])
            hr[j] = jnp.tanh(xr @ lp["w_ih"].T + lp["b_ih"]
                             + hr[j] @ lp["w_hh"].T + lp["b_hh"])
            xf, xr = hf[j], hr[j]
    out = jnp.concatenate([hf[-1], hr[-1]], axis=1)   # (B, 2H)  (.squeeze() no-op, B>1)
    return out @ params["fc_w"].T + params["fc_b"]


def init_params(key, in_size, hidden_size, out_size, num_layers):
    """Deterministic init mimicking PyTorch's default U(-1/sqrt(fan), 1/sqrt(fan))."""
    layers = []
    for i in range(num_layers):
        in_features = in_size if i == 0 else hidden_size
        k = 1.0 / jnp.sqrt(hidden_size)
        key, k1, k2, k3, k4 = jax.random.split(key, 5)
        layers.append(dict(
            w_ih=jax.random.uniform(k1, (hidden_size, in_features), jnp.float32, -k, k),
            w_hh=jax.random.uniform(k2, (hidden_size, hidden_size), jnp.float32, -k, k),
            b_ih=jax.random.uniform(k3, (hidden_size,), jnp.float32, -k, k),
            b_hh=jax.random.uniform(k4, (hidden_size,), jnp.float32, -k, k),
        ))
    kfc = 1.0 / jnp.sqrt(2 * hidden_size)
    key, k1, k2 = jax.random.split(key, 3)
    return dict(
        layers=layers,
        fc_w=jax.random.uniform(k1, (out_size, 2 * hidden_size), jnp.float32, -kfc, kfc),
        fc_b=jax.random.uniform(k2, (out_size,), jnp.float32, -kfc, kfc),
    )


if __name__ == "__main__":
    B, T, IN, H, OUT, L = 2, 8, 4, 32, 16, 2
    root = jax.random.PRNGKey(0)
    kx, kp = jax.random.split(root)
    x = jax.random.normal(kx, (B, T, IN), jnp.float32)
    params = init_params(kp, IN, H, OUT, L)

    out = jax.jit(bidirectional_rnn)(x, params)
    out = jax.block_until_ready(out)

    ref = ref_forward(x, params)
    assert out.shape == (B, OUT), out.shape
    # bf16 MXU inputs (f32 accumulate) -> looser tolerance than the pure-f32 path.
    if not jnp.allclose(out, ref, atol=5e-2, rtol=5e-2):
        raise AssertionError(f"mismatch: max err {jnp.max(jnp.abs(out - ref))}")
    print("KERNEL_OK")
</pallas_src>

<mosaic_0001>
module attributes {stable_mosaic.version = 11 : i64} {
  func.func @kernel(%arg0: i32, %arg1: memref<32x4xbf16, #tpu.memory_space<vmem>>, %arg2: memref<4x32xbf16, #tpu.memory_space<vmem>>, %arg3: memref<32x32xbf16, #tpu.memory_space<vmem>>, %arg4: memref<1x32xf32, #tpu.memory_space<vmem>>, %arg5: memref<32x32xbf16, #tpu.memory_space<vmem>>, %arg6: memref<32x32xbf16, #tpu.memory_space<vmem>>, %arg7: memref<1x32xf32, #tpu.memory_space<vmem>>, %arg8: memref<32x16xbf16, #tpu.memory_space<vmem>>, %arg9: memref<32x16xbf16, #tpu.memory_space<vmem>>, %arg10: memref<1x16xf32, #tpu.memory_space<vmem>>, %arg11: memref<2x16xf32, #tpu.memory_space<vmem>>, %arg12: memref<2x4x32xf32, #tpu.memory_space<vmem>>) attributes {dimension_semantics = [#tpu.dimension_semantics<arbitrary>], iteration_bounds = array<i64: 1>, scalar_prefetch = 0 : i64, scratch_operands = 1 : i64, tpu.core_type = #tpu.core_type<tc>, window_params = [{transform_indices = @transform_0, window_bounds = array<i64: 32, 4>}, {pipeline_mode = #tpu.pipeline_mode<synchronous>, transform_indices = @transform_1, window_bounds = array<i64: 4, 32>}, {pipeline_mode = #tpu.pipeline_mode<synchronous>, transform_indices = @transform_2, window_bounds = array<i64: 32, 32>}, {pipeline_mode = #tpu.pipeline_mode<synchronous>, transform_indices = @transform_3, window_bounds = array<i64: 1, 32>}, {pipeline_mode = #tpu.pipeline_mode<synchronous>, transform_indices = @transform_4, window_bounds = array<i64: 32, 32>}, {pipeline_mode = #tpu.pipeline_mode<synchronous>, transform_indices = @transform_5, window_bounds = array<i64: 32, 32>}, {pipeline_mode = #tpu.pipeline_mode<synchronous>, transform_indices = @transform_6, window_bounds = array<i64: 1, 32>}, {pipeline_mode = #tpu.pipeline_mode<synchronous>, transform_indices = @transform_7, window_bounds = array<i64: 32, 16>}, {pipeline_mode = #tpu.pipeline_mode<synchronous>, transform_indices = @transform_8, window_bounds = array<i64: 32, 16>}, {pipeline_mode = #tpu.pipeline_mode<synchronous>, transform_indices = @transform_9, window_bounds = array<i64: 1, 16>}, {pipeline_mode = #tpu.pipeline_mode<synchronous>, transform_indices = @transform_10, window_bounds = array<i64: 2, 16>}]} {
    %c0_i32 = arith.constant 0 : i32
    %0 = arith.cmpi eq, %arg0, %c0_i32 : i32
    %1 = arith.extui %0 : i1 to i32
    %c0_i32_0 = arith.constant 0 : i32
    %2 = arith.cmpi ne, %1, %c0_i32_0 : i32
    scf.if %2 {
      %cst_51 = arith.constant 0.000000e+00 : f32
      %124 = vector.broadcast %cst_51 : f32 to vector<2x4x32xf32>
      %c0_52 = arith.constant 0 : index
      %c0_53 = arith.constant 0 : index
      %c0_54 = arith.constant 0 : index
      %125 = vector.load %arg12[%c0_52, %c0_53, %c0_54] : memref<2x4x32xf32, #tpu.memory_space<vmem>>, vector<2x4x32xf32>
      tpu.vector_store %arg12[%c0_52, %c0_53, %c0_54], %124 {strides = array<i32>} : memref<2x4x32xf32, #tpu.memory_space<vmem>>, vector<2x4x32xf32>,
    } else {
    }
    %c0 = arith.constant 0 : index
    %c0_1 = arith.constant 0 : index
    %3 = vector.load %arg1[%c0, %c0_1] : memref<32x4xbf16, #tpu.memory_space<vmem>>, vector<32x4xbf16>
    %c0_2 = arith.constant 0 : index
    %c0_3 = arith.constant 0 : index
    %4 = vector.load %arg2[%c0_2, %c0_3] : memref<4x32xbf16, #tpu.memory_space<vmem>>, vector<4x32xbf16>
    %cst = arith.constant dense<0.000000e+00> : vector<32x32xf32>
    %5 = tpu.matmul %3, %4, %cst {dimension_numbers = #tpu.dot_dimension_numbers<[1], [0], [0], [1], [0, 0, 1, 1], [], []>} : vector<32x4xbf16>, vector<4x32xbf16>, vector<32x32xf32> -> vector<32x32xf32>
    %c0_4 = arith.constant 0 : index
    %c0_5 = arith.constant 0 : index
    %6 = vector.load %arg4[%c0_4, %c0_5] : memref<1x32xf32, #tpu.memory_space<vmem>>, vector<1x32xf32>
    %7 = vector.broadcast %6 : vector<1x32xf32> to vector<32x32xf32>
    %8 = arith.addf %5, %7 : vector<32x32xf32>
    %c0_6 = arith.constant 0 : index
    %c0_7 = arith.constant 0 : index
    %9 = vector.load %arg3[%c0_6, %c0_7] : memref<32x32xbf16, #tpu.memory_space<vmem>>, vector<32x32xbf16>
    %c0_8 = arith.constant 0 : index
    %c0_9 = arith.constant 0 : index
    %10 = vector.load %arg5[%c0_8, %c0_9] : memref<32x32xbf16, #tpu.memory_space<vmem>>, vector<32x32xbf16>
    %c0_10 = arith.constant 0 : index
    %c0_11 = arith.constant 0 : index
    %11 = vector.load %arg6[%c0_10, %c0_11] : memref<32x32xbf16, #tpu.memory_space<vmem>>, vector<32x32xbf16>
    %c0_12 = arith.constant 0 : index
    %c0_13 = arith.constant 0 : index
    %12 = vector.load %arg7[%c0_12, %c0_13] : memref<1x32xf32, #tpu.memory_space<vmem>>, vector<1x32xf32>
    %13 = vector.shape_cast %12 : vector<1x32xf32> to vector<1x32xf32>
    %14 = vector.broadcast %13 : vector<1x32xf32> to vector<4x32xf32>
    %c0_14 = arith.constant 0 : index
    %c0_15 = arith.constant 0 : index
    %c0_16 = arith.constant 0 : index
    %15 = vector.load %arg12[%c0_14, %c0_15, %c0_16] : memref<2x4x32xf32, #tpu.memory_space<vmem>>, vector<1x4x32xf32>
    %16 = vector.shape_cast %15 : vector<1x4x32xf32> to vector<4x32xf32>
    %c1 = arith.constant 1 : index
    %c0_17 = arith.constant 0 : index
    %c0_18 = arith.constant 0 : index
    %17 = vector.load %arg12[%c1, %c0_17, %c0_18] : memref<2x4x32xf32, #tpu.memory_space<vmem>>, vector<1x4x32xf32>
    %18 = vector.shape_cast %17 : vector<1x4x32xf32> to vector<4x32xf32>
    %19 = vector.extract_strided_slice %8 {offsets = [0, 0], sizes = [4, 32], strides = [1, 1]} : vector<32x32xf32> to vector<4x32xf32>
    %20 = arith.truncf %16 : vector<4x32xf32> to vector<4x32xbf16>
    %cst_19 = arith.constant dense<0.000000e+00> : vector<4x32xf32>
    %21 = tpu.matmul %20, %9, %cst_19 {dimension_numbers = #tpu.dot_dimension_numbers<[1], [0], [0], [1], [0, 0, 1, 1], [], []>} : vector<4x32xbf16>, vector<32x32xbf16>, vector<4x32xf32> -> vector<4x32xf32>
    %22 = arith.addf %19, %21 : vector<4x32xf32>
    %23 = math.tanh %22 : vector<4x32xf32>
    %24 = arith.truncf %23 : vector<4x32xf32> to vector<4x32xbf16>
    %cst_20 = arith.constant dense<0.000000e+00> : vector<4x32xf32>
    %25 = tpu.matmul %24, %10, %cst_20 {dimension_numbers = #tpu.dot_dimension_numbers<[1], [0], [0], [1], [0, 0, 1, 1], [], []>} : vector<4x32xbf16>, vector<32x32xbf16>, vector<4x32xf32> -> vector<4x32xf32>
    %26 = arith.truncf %18 : vector<4x32xf32> to vector<4x32xbf16>
    %cst_21 = arith.constant dense<0.000000e+00> : vector<4x32xf32>
    %27 = tpu.matmul %26, %11, %cst_21 {dimension_numbers = #tpu.dot_dimension_numbers<[1], [0], [0], [1], [0, 0, 1, 1], [], []>} : vector<4x32xbf16>, vector<32x32xbf16>, vector<4x32xf32> -> vector<4x32xf32>
    %28 = arith.addf %25, %27 : vector<4x32xf32>
    %29 = arith.addf %28, %14 : vector<4x32xf32>
    %30 = math.tanh %29 : vector<4x32xf32>
    %31 = vector.extract_strided_slice %8 {offsets = [4, 0], sizes = [4, 32], strides = [1, 1]} : vector<32x32xf32> to vector<4x32xf32>
    %32 = arith.truncf %23 : vector<4x32xf32> to vector<4x32xbf16>
    %cst_22 = arith.constant dense<0.000000e+00> : vector<4x32xf32>
    %33 = tpu.matmul %32, %9, %cst_22 {dimension_numbers = #tpu.dot_dimension_numbers<[1], [0], [0], [1], [0, 0, 1, 1], [], []>} : vector<4x32xbf16>, vector<32x32xbf16>, vector<4x32xf32> -> vector<4x32xf32>
    %34 = arith.addf %31, %33 : vector<4x32xf32>
    %35 = math.tanh %34 : vector<4x32xf32>
    %36 = arith.truncf %35 : vector<4x32xf32> to vector<4x32xbf16>
    %cst_23 = arith.constant dense<0.000000e+00> : vector<4x32xf32>
    %37 = tpu.matmul %36, %10, %cst_23 {dimension_numbers = #tpu.dot_dimension_numbers<[1], [0], [0], [1], [0, 0, 1, 1], [], []>} : vector<4x32xbf16>, vector<32x32xbf16>, vector<4x32xf32> -> vector<4x32xf32>
    %38 = arith.truncf %30 : vector<4x32xf32> to vector<4x32xbf16>
    %cst_24 = arith.constant dense<0.000000e+00> : vector<4x32xf32>
    %39 = tpu.matmul %38, %11, %cst_24 {dimension_numbers = #tpu.dot_dimension_numbers<[1], [0], [0], [1], [0, 0, 1, 1], [], []>} : vector<4x32xbf16>, vector<32x32xbf16>, vector<4x32xf32> -> vector<4x32xf32>
    %40 = arith.addf %37, %39 : vector<4x32xf32>
    %41 = arith.addf %40, %14 : vector<4x32xf32>
    %42 = math.tanh %41 : vector<4x32xf32>
    %43 = vector.extract_strided_slice %8 {offsets = [8, 0], sizes = [4, 32], strides = [1, 1]} : vector<32x32xf32> to vector<4x32xf32>
    %44 = arith.truncf %35 : vector<4x32xf32> to vector<4x32xbf16>
    %cst_25 = arith.constant dense<0.000000e+00> : vector<4x32xf32>
    %45 = tpu.matmul %44, %9, %cst_25 {dimension_numbers = #tpu.dot_dimension_numbers<[1], [0], [0], [1], [0, 0, 1, 1], [], []>} : vector<4x32xbf16>, vector<32x32xbf16>, vector<4x32xf32> -> vector<4x32xf32>
    %46 = arith.addf %43, %45 : vector<4x32xf32>
    %47 = math.tanh %46 : vector<4x32xf32>
    %48 = arith.truncf %47 : vector<4x32xf32> to vector<4x32xbf16>
    %cst_26 = arith.constant dense<0.000000e+00> : vector<4x32xf32>
    %49 = tpu.matmul %48, %10, %cst_26 {dimension_numbers = #tpu.dot_dimension_numbers<[1], [0], [0], [1], [0, 0, 1, 1], [], []>} : vector<4x32xbf16>, vector<32x32xbf16>, vector<4x32xf32> -> vector<4x32xf32>
    %50 = arith.truncf %42 : vector<4x32xf32> to vector<4x32xbf16>
    %cst_27 = arith.constant dense<0.000000e+00> : vector<4x32xf32>
    %51 = tpu.matmul %50, %11, %cst_27 {dimension_numbers = #tpu.dot_dimension_numbers<[1], [0], [0], [1], [0, 0, 1, 1], [], []>} : vector<4x32xbf16>, vector<32x32xbf16>, vector<4x32xf32> -> vector<4x32xf32>
    %52 = arith.addf %49, %51 : vector<4x32xf32>
    %53 = arith.addf %52, %14 : vector<4x32xf32>
    %54 = math.tanh %53 : vector<4x32xf32>
    %55 = vector.extract_strided_slice %8 {offsets = [12, 0], sizes = [4, 32], strides = [1, 1]} : vector<32x32xf32> to vector<4x32xf32>
    %56 = arith.truncf %47 : vector<4x32xf32> to vector<4x32xbf16>
    %cst_28 = arith.constant dense<0.000000e+00> : vector<4x32xf32>
    %57 = tpu.matmul %56, %9, %cst_28 {dimension_numbers = #tpu.dot_dimension_numbers<[1], [0], [0], [1], [0, 0, 1, 1], [], []>} : vector<4x32xbf16>, vector<32x32xbf16>, vector<4x32xf32> -> vector<4x32xf32>
    %58 = arith.addf %55, %57 : vector<4x32xf32>
    %59 = math.tanh %58 : vector<4x32xf32>
    %60 = arith.truncf %59 : vector<4x32xf32> to vector<4x32xbf16>
    %cst_29 = arith.constant dense<0.000000e+00> : vector<4x32xf32>
    %61 = tpu.matmul %60, %10, %cst_29 {dimension_numbers = #tpu.dot_dimension_numbers<[1], [0], [0], [1], [0, 0, 1, 1], [], []>} : vector<4x32xbf16>, vector<32x32xbf16>, vector<4x32xf32> -> vector<4x32xf32>
    %62 = arith.truncf %54 : vector<4x32xf32> to vector<4x32xbf16>
    %cst_30 = arith.constant dense<0.000000e+00> : vector<4x32xf32>
    %63 = tpu.matmul %62, %11, %cst_30 {dimension_numbers = #tpu.dot_dimension_numbers<[1], [0], [0], [1], [0, 0, 1, 1], [], []>} : vector<4x32xbf16>, vector<32x32xbf16>, vector<4x32xf32> -> vector<4x32xf32>
    %64 = arith.addf %61, %63 : vector<4x32xf32>
    %65 = arith.addf %64, %14 : vector<4x32xf32>
    %66 = math.tanh %65 : vector<4x32xf32>
    %67 = vector.extract_strided_slice %8 {offsets = [16, 0], sizes = [4, 32], strides = [1, 1]} : vector<32x32xf32> to vector<4x32xf32>
    %68 = arith.truncf %59 : vector<4x32xf32> to vector<4x32xbf16>
    %cst_31 = arith.constant dense<0.000000e+00> : vector<4x32xf32>
    %69 = tpu.matmul %68, %9, %cst_31 {dimension_numbers = #tpu.dot_dimension_numbers<[1], [0], [0], [1], [0, 0, 1, 1], [], []>} : vector<4x32xbf16>, vector<32x32xbf16>, vector<4x32xf32> -> vector<4x32xf32>
    %70 = arith.addf %67, %69 : vector<4x32xf32>
    %71 = math.tanh %70 : vector<4x32xf32>
    %72 = arith.truncf %71 : vector<4x32xf32> to vector<4x32xbf16>
    %cst_32 = arith.constant dense<0.000000e+00> : vector<4x32xf32>
    %73 = tpu.matmul %72, %10, %cst_32 {dimension_numbers = #tpu.dot_dimension_numbers<[1], [0], [0], [1], [0, 0, 1, 1], [], []>} : vector<4x32xbf16>, vector<32x32xbf16>, vector<4x32xf32> -> vector<4x32xf32>
    %74 = arith.truncf %66 : vector<4x32xf32> to vector<4x32xbf16>
    %cst_33 = arith.constant dense<0.000000e+00> : vector<4x32xf32>
    %75 = tpu.matmul %74, %11, %cst_33 {dimension_numbers = #tpu.dot_dimension_numbers<[1], [0], [0], [1], [0, 0, 1, 1], [], []>} : vector<4x32xbf16>, vector<32x32xbf16>, vector<4x32xf32> -> vector<4x32xf32>
    %76 = arith.addf %73, %75 : vector<4x32xf32>
    %77 = arith.addf %76, %14 : vector<4x32xf32>
    %78 = math.tanh %77 : vector<4x32xf32>
    %79 = vector.extract_strided_slice %8 {offsets = [20, 0], sizes = [4, 32], strides = [1, 1]} : vector<32x32xf32> to vector<4x32xf32>
    %80 = arith.truncf %71 : vector<4x32xf32> to vector<4x32xbf16>
    %cst_34 = arith.constant dense<0.000000e+00> : vector<4x32xf32>
    %81 = tpu.matmul %80, %9, %cst_34 {dimension_numbers = #tpu.dot_dimension_numbers<[1], [0], [0], [1], [0, 0, 1, 1], [], []>} : vector<4x32xbf16>, vector<32x32xbf16>, vector<4x32xf32> -> vector<4x32xf32>
    %82 = arith.addf %79, %81 : vector<4x32xf32>
    %83 = math.tanh %82 : vector<4x32xf32>
    %84 = arith.truncf %83 : vector<4x32xf32> to vector<4x32xbf16>
    %cst_35 = arith.constant dense<0.000000e+00> : vector<4x32xf32>
    %85 = tpu.matmul %84, %10, %cst_35 {dimension_numbers = #tpu.dot_dimension_numbers<[1], [0], [0], [1], [0, 0, 1, 1], [], []>} : vector<4x32xbf16>, vector<32x32xbf16>, vector<4x32xf32> -> vector<4x32xf32>
    %86 = arith.truncf %78 : vector<4x32xf32> to vector<4x32xbf16>
    %cst_36 = arith.constant dense<0.000000e+00> : vector<4x32xf32>
    %87 = tpu.matmul %86, %11, %cst_36 {dimension_numbers = #tpu.dot_dimension_numbers<[1], [0], [0], [1], [0, 0, 1, 1], [], []>} : vector<4x32xbf16>, vector<32x32xbf16>, vector<4x32xf32> -> vector<4x32xf32>
    %88 = arith.addf %85, %87 : vector<4x32xf32>
    %89 = arith.addf %88, %14 : vector<4x32xf32>
    %90 = math.tanh %89 : vector<4x32xf32>
    %91 = vector.extract_strided_slice %8 {offsets = [24, 0], sizes = [4, 32], strides = [1, 1]} : vector<32x32xf32> to vector<4x32xf32>
    %92 = arith.truncf %83 : vector<4x32xf32> to vector<4x32xbf16>
    %cst_37 = arith.constant dense<0.000000e+00> : vector<4x32xf32>
    %93 = tpu.matmul %92, %9, %cst_37 {dimension_numbers = #tpu.dot_dimension_numbers<[1], [0], [0], [1], [0, 0, 1, 1], [], []>} : vector<4x32xbf16>, vector<32x32xbf16>, vector<4x32xf32> -> vector<4x32xf32>
    %94 = arith.addf %91, %93 : vector<4x32xf32>
    %95 = math.tanh %94 : vector<4x32xf32>
    %96 = arith.truncf %95 : vector<4x32xf32> to vector<4x32xbf16>
    %cst_38 = arith.constant dense<0.000000e+00> : vector<4x32xf32>
    %97 = tpu.matmul %96, %10, %cst_38 {dimension_numbers = #tpu.dot_dimension_numbers<[1], [0], [0], [1], [0, 0, 1, 1], [], []>} : vector<4x32xbf16>, vector<32x32xbf16>, vector<4x32xf32> -> vector<4x32xf32>
    %98 = arith.truncf %90 : vector<4x32xf32> to vector<4x32xbf16>
    %cst_39 = arith.constant dense<0.000000e+00> : vector<4x32xf32>
    %99 = tpu.matmul %98, %11, %cst_39 {dimension_numbers = #tpu.dot_dimension_numbers<[1], [0], [0], [1], [0, 0, 1, 1], [], []>} : vector<4x32xbf16>, vector<32x32xbf16>, vector<4x32xf32> -> vector<4x32xf32>
    %100 = arith.addf %97, %99 : vector<4x32xf32>
    %101 = arith.addf %100, %14 : vector<4x32xf32>
    %102 = math.tanh %101 : vector<4x32xf32>
    %103 = vector.extract_strided_slice %8 {offsets = [28, 0], sizes = [4, 32], strides = [1, 1]} : vector<32x32xf32> to vector<4x32xf32>
    %104 = arith.truncf %95 : vector<4x32xf32> to vector<4x32xbf16>
    %cst_40 = arith.constant dense<0.000000e+00> : vector<4x32xf32>
    %105 = tpu.matmul %104, %9, %cst_40 {dimension_numbers = #tpu.dot_dimension_numbers<[1], [0], [0], [1], [0, 0, 1, 1], [], []>} : vector<4x32xbf16>, vector<32x32xbf16>, vector<4x32xf32> -> vector<4x32xf32>
    %106 = arith.addf %103, %105 : vector<4x32xf32>
    %107 = math.tanh %106 : vector<4x32xf32>
    %108 = arith.truncf %107 : vector<4x32xf32> to vector<4x32xbf16>
    %cst_41 = arith.constant dense<0.000000e+00> : vector<4x32xf32>
    %109 = tpu.matmul %108, %10, %cst_41 {dimension_numbers = #tpu.dot_dimension_numbers<[1], [0], [0], [1], [0, 0, 1, 1], [], []>} : vector<4x32xbf16>, vector<32x32xbf16>, vector<4x32xf32> -> vector<4x32xf32>
    %110 = arith.truncf %102 : vector<4x32xf32> to vector<4x32xbf16>
    %cst_42 = arith.constant dense<0.000000e+00> : vector<4x32xf32>
    %111 = tpu.matmul %110, %11, %cst_42 {dimension_numbers = #tpu.dot_dimension_numbers<[1], [0], [0], [1], [0, 0, 1, 1], [], []>} : vector<4x32xbf16>, vector<32x32xbf16>, vector<4x32xf32> -> vector<4x32xf32>
    %112 = arith.addf %109, %111 : vector<4x32xf32>
    %113 = arith.addf %112, %14 : vector<4x32xf32>
    %114 = math.tanh %113 : vector<4x32xf32>
    %c0_43 = arith.constant 0 : index
    %c0_44 = arith.constant 0 : index
    %c0_45 = arith.constant 0 : index
    %115 = vector.load %arg12[%c0_43, %c0_44, %c0_45] : memref<2x4x32xf32, #tpu.memory_space<vmem>>, vector<1x4x32xf32>
    %116 = vector.shape_cast %115 : vector<1x4x32xf32> to vector<4x32xf32>
    %117 = vector.shape_cast %107 : vector<4x32xf32> to vector<1x4x32xf32>
    tpu.vector_store %arg12[%c0_43, %c0_44, %c0_45], %117 {strides = array<i32>} : memref<2x4x32xf32, #tpu.memory_space<vmem>>, vector<1x4x32xf32>,
    %c1_46 = arith.constant 1 : index
    %c0_47 = arith.constant 0 : index
    %c0_48 = arith.constant 0 : index
    %118 = vector.load %arg12[%c1_46, %c0_47, %c0_48] : memref<2x4x32xf32, #tpu.memory_space<vmem>>, vector<1x4x32xf32>
    %119 = vector.shape_cast %118 : vector<1x4x32xf32> to vector<4x32xf32>
    %120 = vector.shape_cast %114 : vector<4x32xf32> to vector<1x4x32xf32>
    tpu.vector_store %arg12[%c1_46, %c0_47, %c0_48], %120 {strides = array<i32>} : memref<2x4x32xf32, #tpu.memory_space<vmem>>, vector<1x4x32xf32>,
    %c0_i32_49 = arith.constant 0 : i32
    %121 = arith.cmpi eq, %arg0, %c0_i32_49 : i32
    %122 = arith.extui %121 : i1 to i32
    %c0_i32_50 = arith.constant 0 : i32
    %123 = arith.cmpi ne, %122, %c0_i32_50 : i32
    scf.if %123 {
      %124 = vector.extract_strided_slice %114 {offsets = [0, 0], sizes = [2, 32], strides = [1, 1]} : vector<4x32xf32> to vector<2x32xf32>
      %125 = arith.truncf %124 : vector<2x32xf32> to vector<2x32xbf16>
      %126 = vector.extract_strided_slice %114 {offsets = [2, 0], sizes = [2, 32], strides = [1, 1]} : vector<4x32xf32> to vector<2x32xf32>
      %127 = arith.truncf %126 : vector<2x32xf32> to vector<2x32xbf16>
      %c0_51 = arith.constant 0 : index
      %c0_52 = arith.constant 0 : index
      %128 = vector.load %arg8[%c0_51, %c0_52] : memref<32x16xbf16, #tpu.memory_space<vmem>>, vector<32x16xbf16>
      %cst_53 = arith.constant dense<0.000000e+00> : vector<2x16xf32>
      %129 = tpu.matmul %125, %128, %cst_53 {dimension_numbers = #tpu.dot_dimension_numbers<[1], [0], [0], [1], [0, 0, 1, 1], [], []>} : vector<2x32xbf16>, vector<32x16xbf16>, vector<2x16xf32> -> vector<2x16xf32>
      %c0_54 = arith.constant 0 : index
      %c0_55 = arith.constant 0 : index
      %130 = vector.load %arg9[%c0_54, %c0_55] : memref<32x16xbf16, #tpu.memory_space<vmem>>, vector<32x16xbf16>
      %cst_56 = arith.constant dense<0.000000e+00> : vector<2x16xf32>
      %131 = tpu.matmul %127, %130, %cst_56 {dimension_numbers = #tpu.dot_dimension_numbers<[1], [0], [0], [1], [0, 0, 1, 1], [], []>} : vector<2x32xbf16>, vector<32x16xbf16>, vector<2x16xf32> -> vector<2x16xf32>
      %132 = arith.addf %129, %131 : vector<2x16xf32>
      %c0_57 = arith.constant 0 : index
      %c0_58 = arith.constant 0 : index
      %133 = vector.load %arg10[%c0_57, %c0_58] : memref<1x16xf32, #tpu.memory_space<vmem>>, vector<1x16xf32>
      %134 = vector.broadcast %133 : vector<1x16xf32> to vector<2x16xf32>
      %135 = arith.addf %132, %134 : vector<2x16xf32>
      %c0_59 = arith.constant 0 : index
      %c0_60 = arith.constant 0 : index
      %136 = vector.load %arg11[%c0_59, %c0_60] : memref<2x16xf32, #tpu.memory_space<vmem>>, vector<2x16xf32>
      tpu.vector_store %arg11[%c0_59, %c0_60], %135 {strides = array<i32>} : memref<2x16xf32, #tpu.memory_space<vmem>>, vector<2x16xf32>,
    } else {
    }
    return
  }
  func.func @transform_0(%arg0: i32) -> (i32, i32) {
    %c0_i32 = arith.constant 0 : i32
    %c0_i32_0 = arith.constant 0 : i32
    return %arg0, %c0_i32 : i32, i32
  }
  func.func @transform_1(%arg0: i32) -> (i32, i32) {
    %c0_i32 = arith.constant 0 : i32
    %c0_i32_0 = arith.constant 0 : i32
    %c0_i32_1 = arith.constant 0 : i32
    return %c0_i32, %c0_i32_0 : i32, i32
  }
  func.func @transform_2(%arg0: i32) -> (i32, i32) {
    %c0_i32 = arith.constant 0 : i32
    %c0_i32_0 = arith.constant 0 : i32
    %c0_i32_1 = arith.constant 0 : i32
    return %c0_i32, %c0_i32_0 : i32, i32
  }
  func.func @transform_3(%arg0: i32) -> (i32, i32) {
    %c0_i32 = arith.constant 0 : i32
    %c0_i32_0 = arith.constant 0 : i32
    %c0_i32_1 = arith.constant 0 : i32
    return %c0_i32, %c0_i32_0 : i32, i32
  }
  func.func @transform_4(%arg0: i32) -> (i32, i32) {
    %c0_i32 = arith.constant 0 : i32
    %c0_i32_0 = arith.constant 0 : i32
    %c0_i32_1 = arith.constant 0 : i32
    return %c0_i32, %c0_i32_0 : i32, i32
  }
  func.func @transform_5(%arg0: i32) -> (i32, i32) {
    %c0_i32 = arith.constant 0 : i32
    %c0_i32_0 = arith.constant 0 : i32
    %c0_i32_1 = arith.constant 0 : i32
    return %c0_i32, %c0_i32_0 : i32, i32
  }
  func.func @transform_6(%arg0: i32) -> (i32, i32) {
    %c0_i32 = arith.constant 0 : i32
    %c0_i32_0 = arith.constant 0 : i32
    %c0_i32_1 = arith.constant 0 : i32
    return %c0_i32, %c0_i32_0 : i32, i32
  }
  func.func @transform_7(%arg0: i32) -> (i32, i32) {
    %c0_i32 = arith.constant 0 : i32
    %c0_i32_0 = arith.constant 0 : i32
    %c0_i32_1 = arith.constant 0 : i32
    return %c0_i32, %c0_i32_0 : i32, i32
  }
  func.func @transform_8(%arg0: i32) -> (i32, i32) {
    %c0_i32 = arith.constant 0 : i32
    %c0_i32_0 = arith.constant 0 : i32
    %c0_i32_1 = arith.constant 0 : i32
    return %c0_i32, %c0_i32_0 : i32, i32
  }
  func.func @transform_9(%arg0: i32) -> (i32, i32) {
    %c0_i32 = arith.constant 0 : i32
    %c0_i32_0 = arith.constant 0 : i32
    %c0_i32_1 = arith.constant 0 : i32
    return %c0_i32, %c0_i32_0 : i32, i32
  }
  func.func @transform_10(%arg0: i32) -> (i32, i32) {
    %c0_i32 = arith.constant 0 : i32
    %c0_i32_0 = arith.constant 0 : i32
    %c0_i32_1 = arith.constant 0 : i32
    return %c0_i32, %c0_i32_0 : i32, i32
  }
}

</mosaic_0001>

<llo_original>
// kernel: bidirectional_rnn.1
$region0: #{bidirectional_rnn.1}
  #allocation0 [shape = 'u32[]', space=smem, size = 0x4, offset = 0x4, fixed_abs, tag = 'smem constant byte address 0x4 - core index']
  #allocation1 [shape = 'u32[144,128]{1,0:T(1,128)}', space=vmem, size = 0x12000, scoped, tag = 'internal scratch']
  #allocation2 [shape = 'f32[2,4,32]{2,1,0:T(4,128)}', space=vmem, size = 0x1000, scoped, tag = 'scratch operand']
  %s0 = inlined_call_operand.vmem [shape: bf16[32,4], index: 0, kind: input, shape index: {}]
  %s1 = inlined_call_operand.vmem [shape: bf16[4,32], index: 1, kind: input, shape index: {}]
  %s2 = inlined_call_operand.vmem [shape: bf16[32,32], index: 2, kind: input, shape index: {}]
  %s3 = inlined_call_operand.vmem [shape: f32[1,32], index: 3, kind: input, shape index: {}]
  %s4 = inlined_call_operand.vmem [shape: bf16[32,32], index: 4, kind: input, shape index: {}]
  %s5 = inlined_call_operand.vmem [shape: bf16[32,32], index: 5, kind: input, shape index: {}]
  %s6 = inlined_call_operand.vmem [shape: f32[1,32], index: 6, kind: input, shape index: {}]
  %s7 = inlined_call_operand.vmem [shape: bf16[32,16], index: 7, kind: input, shape index: {}]
  %s8 = inlined_call_operand.vmem [shape: bf16[32,16], index: 8, kind: input, shape index: {}]
  %s9 = inlined_call_operand.vmem [shape: f32[1,16], index: 9, kind: input, shape index: {}]
  %s10 = inlined_call_operand.hbm [shape: f32[2,16], index: 10, kind: output, shape index: {}]
  %s11 = sld [smem:[#allocation0]]
  $region58: #{bidirectional_rnn.1} parent=0
    _
  %s13 = ssub.s32 1, %s11
  %s14 = scalar_select 0, %s13, %s11
  $region1: #{bidirectional_rnn.1} parent=0
    #allocation3 [shape = 'u8[1024]{0}', space=vmem, size = 0x400, scoped, tag = 'output window, operand 0, single buffered']
    #allocation4 [shape = 's32[1]{0}', space=sflag, size = 0x4, scoped, tag = 'scoped memory for bidirectional_rnn.1']
    %15 = vsyncpa [#allocation4], 0
    // Predicated region
    $region2: #{bidirectional_rnn.1} parent=1 // pred_check
      _
    $region3: #{bidirectional_rnn.1} parent=1 // pred_check_branch
      %17 = sbr.rel (0) target = $region5
    $region4: #{bidirectional_rnn.1} parent=1 // pred_region
      _
    $region5: #{bidirectional_rnn.1} parent=1 // pred_fallthru
      _
    // Predicated region
    $region6: #{bidirectional_rnn.1} parent=1 // pred_check
      _
    $region7: #{bidirectional_rnn.1} parent=1 // pred_check_branch
      %19 = sbr.rel (0) target = $region9
    $region8: #{bidirectional_rnn.1} parent=1 // pred_region
      _
    $region9: #{bidirectional_rnn.1} parent=1 // pred_fallthru
      _
    // Predicated region
    $region10: #{bidirectional_rnn.1} parent=1 // pred_check
      _
    $region11: #{bidirectional_rnn.1} parent=1 // pred_check_branch
      %21 = sbr.rel (0) target = $region13
    $region12: #{bidirectional_rnn.1} parent=1 // pred_region
      _
    $region13: #{bidirectional_rnn.1} parent=1 // pred_fallthru
      _
    // Predicated region
    $region14: #{bidirectional_rnn.1} parent=1 // pred_check
      _
    $region15: #{bidirectional_rnn.1} parent=1 // pred_check_branch
      %23 = sbr.rel (0) target = $region17
    $region16: #{bidirectional_rnn.1} parent=1 // pred_region
      _
    $region17: #{bidirectional_rnn.1} parent=1 // pred_fallthru
      _
    // Predicated region
    $region18: #{bidirectional_rnn.1} parent=1 // pred_check
      _
    $region19: #{bidirectional_rnn.1} parent=1 // pred_check_branch
      %25 = sbr.rel (0) target = $region21
    $region20: #{bidirectional_rnn.1} parent=1 // pred_region
      _
    $region21: #{bidirectional_rnn.1} parent=1 // pred_fallthru
      _
    // Predicated region
    $region22: #{bidirectional_rnn.1} parent=1 // pred_check
      _
    $region23: #{bidirectional_rnn.1} parent=1 // pred_check_branch
      %27 = sbr.rel (0) target = $region25
    $region24: #{bidirectional_rnn.1} parent=1 // pred_region
      _
    $region25: #{bidirectional_rnn.1} parent=1 // pred_fallthru
      _
    // Predicated region
    $region26: #{bidirectional_rnn.1} parent=1 // pred_check
      _
    $region27: #{bidirectional_rnn.1} parent=1 // pred_check_branch
      %29 = sbr.rel (0) target = $region29
    $region28: #{bidirectional_rnn.1} parent=1 // pred_region
      _
    $region29: #{bidirectional_rnn.1} parent=1 // pred_fallthru
      _
    // Predicated region
    $region30: #{bidirectional_rnn.1} parent=1 // pred_check
      _
    $region31: #{bidirectional_rnn.1} parent=1 // pred_check_branch
      %31 = sbr.rel (0) target = $region33
    $region32: #{bidirectional_rnn.1} parent=1 // pred_region
      _
    $region33: #{bidirectional_rnn.1} parent=1 // pred_fallthru
      _
    // Predicated region
    $region34: #{bidirectional_rnn.1} parent=1 // pred_check
      _
    $region35: #{bidirectional_rnn.1} parent=1 // pred_check_branch
      %33 = sbr.rel (0) target = $region37
    $region36: #{bidirectional_rnn.1} parent=1 // pred_region
      _
    $region37: #{bidirectional_rnn.1} parent=1 // pred_fallthru
      _
    // Predicated region
    $region38: #{bidirectional_rnn.1} parent=1 // pred_check
      _
    $region39: #{bidirectional_rnn.1} parent=1 // pred_check_branch
      %35 = sbr.rel (0) target = $region41
    $region40: #{bidirectional_rnn.1} parent=1 // pred_region
      _
    $region41: #{bidirectional_rnn.1} parent=1 // pred_fallthru
      _
    %p37 = scmp.eq.s32.totalorder 0, 0
    // Predicated region
    $region42: #{bidirectional_rnn.1} parent=1 // pred_check
      %p38 = pneg %p37
    $region43: #{bidirectional_rnn.1} parent=1 // pred_check_branch
      %40 = sbr.rel (%p38) target = $region45
    $region44: #{bidirectional_rnn.1} parent=1 // pred_region
      %vm41 = vcmask 257024
      %42 = vst.msk [vmem:[#allocation2] sm:$0xf] %vm41, 0.0
      %43 = vst.msk [vmem:[#allocation2 + $0x4] sm:$0xf] %vm41, 0.0
    $region45: #{bidirectional_rnn.1} parent=1 // pred_fallthru
      _
    %v44 = vld [vmem:[%s0] sm:$0xf]
    %v45 = vld [vmem:[%s0 + $0x4] sm:$0xf]
    %v46 = vld [vmem:[%s0 + $0x8] sm:$0xf]
    %v47 = vld [vmem:[%s0 + $0xc] sm:$0xf]
    %v48 = vld [vmem:[%s1] sm:$0x3]
    %v49 = vld [vmem:[%s3] sm:$0x1]
    %v51 = vlaneseq
    %v52 = vshrl.u32 %v51, 7
    %v53 = vsub.s32 0, %v52
    %v54 = vrot.slane %v49, %v53
    %v60 = vunpack.c.l.b16 %v44
    %v61 = vunpack.c.l.b16 %v45
    %v62 = vunpack.c.l.b16 %v46
    %v63 = vunpack.c.l.b16 %v47
    %v64 = vpack.c.b16 %v61, %v60
    %v65 = vpack.c.b16 %v63, %v62
    %vm66 = vcmask 31744
    %v68 = vsel %vm66, %v64, 0
    %v71 = vsel %vm66, %v65, 0
    %vm73 = vcmask 1041408
    %v75 = vsel %vm73, %v48, 0
    %77 = vmatprep.subr.bf16.mxu0 0
    %78 = vmatpush1.bf16.msra.mxu0 0
    %79 = vmatprep.subr.bf16.mxu0 0
    %80 = vmatpush1.bf16.msra.mxu0 0
    %81 = vmatprep.subr.bf16.mxu0 0
    %82 = vmatpush1.bf16.msra.mxu0 0
    %83 = vmatprep.subr.bf16.mxu0 0
    %84 = vmatpush1.bf16.msra.mxu0 0
    %85 = vmatprep.subr.bf16.mxu0 0
    %86 = vmatpush1.bf16.msra.mxu0 0
    %87 = vmatprep.subr.bf16.mxu0 0
    %88 = vmatpush1.bf16.msra.mxu0 0
    %89 = vmatprep.subr.bf16.mxu0 0
    %90 = vmatpush1.bf16.msra.mxu0 0
    %91 = vmatprep.subr.bf16.mxu0 0
    %92 = vmatpush1.bf16.msra.mxu0 %v75
    %93 = vmatprep.subr.bf16.mxu0 0
    %94 = vmatpush2.bf16.msra.mxu0 0
    %95 = vmatprep.subr.bf16.mxu0 0
    %96 = vmatpush2.bf16.msra.mxu0 0
    %97 = vmatprep.subr.bf16.mxu0 0
    %98 = vmatpush2.bf16.msra.mxu0 0
    %99 = vmatprep.subr.bf16.mxu0 0
    %100 = vmatpush2.bf16.msra.mxu0 0
    %101 = vmatprep.subr.bf16.mxu0 0
    %102 = vmatpush2.bf16.msra.mxu0 0
    %103 = vmatprep.subr.bf16.mxu0 0
    %104 = vmatpush2.bf16.msra.mxu0 0
    %105 = vmatprep.subr.bf16.mxu0 0
    %106 = vmatpush2.bf16.msra.mxu0 0
    %107 = vmatprep.subr.bf16.mxu0 0
    %108 = vmatpush2.bf16.msra.mxu0 0
    %109 = vmatprep.mubr.bf16.mxu0 0
    %110 = vmatmul.mubr.bf16.gmra.mxu0 %v68
    %v111 = vpop.f32.mrf.mxu0
    %v112 = vadd.f32 %v54, %v111
    %v113 = vpop.f32.mrf.mxu0
    %v114 = vpop.f32.mrf.mxu0
    %v115 = vadd.f32 %v54, %v114
    %v116 = vpop.f32.mrf.mxu0
    %117 = vmatprep.mubr.bf16.mxu0 0
    %118 = vmatmul.mubr.bf16.gmra.mxu0 %v71
    %v119 = vpop.f32.mrf.mxu0
    %v120 = vadd.f32 %v54, %v119
    %v121 = vpop.f32.mrf.mxu0
    %v122 = vpop.f32.mrf.mxu0
    %v123 = vadd.f32 %v54, %v122
    %v124 = vpop.f32.mrf.mxu0
    %125 = vdwg.mxu0
    %v126 = vld [vmem:[%s2] sm:$0xf]
    %v127 = vld [vmem:[%s2 + $0x4] sm:$0xf]
    %v128 = vld [vmem:[%s2 + $0x8] sm:$0xf]
    %v129 = vld [vmem:[%s2 + $0xc] sm:$0xf]
    %v130 = vld [vmem:[%s4] sm:$0xf]
    %v131 = vld [vmem:[%s4 + $0x4] sm:$0xf]
    %v132 = vld [vmem:[%s4 + $0x8] sm:$0xf]
    %v133 = vld [vmem:[%s4 + $0xc] sm:$0xf]
    %v134 = vld [vmem:[%s5] sm:$0xf]
    %v135 = vld [vmem:[%s5 + $0x4] sm:$0xf]
    %v136 = vld [vmem:[%s5 + $0x8] sm:$0xf]
    %v137 = vld [vmem:[%s5 + $0xc] sm:$0xf]
    %v138 = vld [vmem:[%s6] sm:$0x1]
    %v140 = vlaneseq
    %v141 = vshrl.u32 %v140, 7
    %v142 = vsub.s32 0, %v141
    %v143 = vrot.slane %v138, %v142
    %v145 = vld [vmem:[#allocation2] sm:$0xf]
    %s146 = scalar_lea.vmem [#allocation2], 4
    %v147 = vld [vmem:[%s146] sm:$0xf]
    %v148 = vpack.c.bf16 %v145, %v145
    %v153 = vunpack.c.l.b16 %v126
    %v154 = vunpack.c.l.b16 %v127
    %v155 = vunpack.c.l.b16 %v128
    %v156 = vunpack.c.l.b16 %v129
    %v157 = vpack.c.b16 %v154, %v153
    %v158 = vpack.c.b16 %v156, %v155
    %vm161 = vcmask 261120
    %v163 = vsel %vm161, %v148, 0
    %165 = vmatprep.subr.bf16.mxu0 0
    %166 = vmatpush1.bf16.msra.mxu0 0
    %167 = vmatprep.subr.bf16.mxu0 0
    %168 = vmatpush1.bf16.msra.mxu0 0
    %169 = vmatprep.subr.bf16.mxu0 0
    %170 = vmatpush1.bf16.msra.mxu0 0
    %171 = vmatprep.subr.bf16.mxu0 0
    %172 = vmatpush1.bf16.msra.mxu0 0
    %173 = vmatprep.subr.bf16.mxu0 0
    %174 = vmatpush1.bf16.msra.mxu0 0
    %175 = vmatprep.subr.bf16.mxu0 0
    %176 = vmatpush1.bf16.msra.mxu0 0
    %177 = vmatprep.subr.bf16.mxu0 0
    %178 = vmatpush1.bf16.msra.mxu0 %v158
    %179 = vmatprep.subr.bf16.mxu0 0
    %180 = vmatpush1.bf16.msra.mxu0 %v157
    %181 = vmatprep.subr.bf16.mxu0 0
    %182 = vmatpush2.bf16.msra.mxu0 0
    %183 = vmatprep.subr.bf16.mxu0 0
    %184 = vmatpush2.bf16.msra.mxu0 0
    %185 = vmatprep.subr.bf16.mxu0 0
    %186 = vmatpush2.bf16.msra.mxu0 0
    %187 = vmatprep.subr.bf16.mxu0 0
    %188 = vmatpush2.bf16.msra.mxu0 0
    %189 = vmatprep.subr.bf16.mxu0 0
    %190 = vmatpush2.bf16.msra.mxu0 0
    %191 = vmatprep.subr.bf16.mxu0 0
    %192 = vmatpush2.bf16.msra.mxu0 0
    %193 = vmatprep.subr.bf16.mxu0 0
    %194 = vmatpush2.bf16.msra.mxu0 0
    %195 = vmatprep.subr.bf16.mxu0 0
    %196 = vmatpush2.bf16.msra.mxu0 0
    %197 = vmatprep.mubr.bf16.mxu0 0
    %198 = vmatmul.mubr.bf16.gmra.mxu0 %v163
    %v199 = vpop.f32.mrf.mxu0
    %v200 = vadd.f32 0.0, %v199
    %v201 = vpop.f32.mrf.mxu0
    %v202 = vpop.f32.mrf.mxu0
    %v203 = vpop.f32.mrf.mxu0
    %204 = vdwg.mxu0
    %v205 = vadd.f32 %v112, %v200
    %v206 = vtanh.pop %v205
    %v207 = vpack.c.bf16 %v206, %v206
    %v208 = vpack.c.bf16 %v147, %v147
    %v213 = vunpack.c.l.b16 %v134
    %v214 = vunpack.c.l.b16 %v135
    %v215 = vunpack.c.l.b16 %v136
    %v216 = vunpack.c.l.b16 %v137
    %v217 = vpack.c.b16 %v214, %v213
    %v218 = vpack.c.b16 %v216, %v215
    %v222 = vsel %vm161, %v208, 0
    %224 = vmatprep.subr.bf16.mxu0 0
    %225 = vmatpush1.bf16.msra.mxu0 0
    %226 = vmatprep.subr.bf16.mxu0 0
    %227 = vmatpush1.bf16.msra.mxu0 0
    %228 = vmatprep.subr.bf16.mxu0 0
    %229 = vmatpush1.bf16.msra.mxu0 0
    %230 = vmatprep.subr.bf16.mxu0 0
    %231 = vmatpush1.bf16.msra.mxu0 0
    %232 = vmatprep.subr.bf16.mxu0 0
    %233 = vmatpush1.bf16.msra.mxu0 0
    %234 = vmatprep.subr.bf16.mxu0 0
    %235 = vmatpush1.bf16.msra.mxu0 0
    %236 = vmatprep.subr.bf16.mxu0 0
    %237 = vmatpush1.bf16.msra.mxu0 %v218
    %238 = vmatprep.subr.bf16.mxu0 0
    %239 = vmatpush1.bf16.msra.mxu0 %v217
    %240 = vmatprep.subr.bf16.mxu0 0
    %241 = vmatpush2.bf16.msra.mxu0 0
    %242 = vmatprep.subr.bf16.mxu0 0
    %243 = vmatpush2.bf16.msra.mxu0 0
    %244 = vmatprep.subr.bf16.mxu0 0
    %245 = vmatpush2.bf16.msra.mxu0 0
    %246 = vmatprep.subr.bf16.mxu0 0
    %247 = vmatpush2.bf16.msra.mxu0 0
    %248 = vmatprep.subr.bf16.mxu0 0
    %249 = vmatpush2.bf16.msra.mxu0 0
    %250 = vmatprep.subr.bf16.mxu0 0
    %251 = vmatpush2.bf16.msra.mxu0 0
    %252 = vmatprep.subr.bf16.mxu0 0
    %253 = vmatpush2.bf16.msra.mxu0 0
    %254 = vmatprep.subr.bf16.mxu0 0
    %255 = vmatpush2.bf16.msra.mxu0 0
    %256 = vmatprep.mubr.bf16.mxu0 0
    %257 = vmatmul.mubr.bf16.gmra.mxu0 %v222
    %v258 = vpop.f32.mrf.mxu0
    %v259 = vadd.f32 0.0, %v258
    %v260 = vpop.f32.mrf.mxu0
    %v261 = vpop.f32.mrf.mxu0
    %v262 = vpop.f32.mrf.mxu0
    %263 = vdwg.mxu0
    %v268 = vunpack.c.l.b16 %v130
    %v269 = vunpack.c.l.b16 %v131
    %v270 = vunpack.c.l.b16 %v132
    %v271 = vunpack.c.l.b16 %v133
    %v272 = vpack.c.b16 %v269, %v268
    %v273 = vpack.c.b16 %v271, %v270
    %v277 = vsel %vm161, %v207, 0
    %279 = vmatprep.subr.bf16.mxu0 0
    %280 = vmatpush1.bf16.msra.mxu0 0
    %281 = vmatprep.subr.bf16.mxu0 0
    %282 = vmatpush1.bf16.msra.mxu0 0
    %283 = vmatprep.subr.bf16.mxu0 0
    %284 = vmatpush1.bf16.msra.mxu0 0
    %285 = vmatprep.subr.bf16.mxu0 0
    %286 = vmatpush1.bf16.msra.mxu0 0
    %287 = vmatprep.subr.bf16.mxu0 0
    %288 = vmatpush1.bf16.msra.mxu0 0
    %289 = vmatprep.subr.bf16.mxu0 0
    %290 = vmatpush1.bf16.msra.mxu0 0
    %291 = vmatprep.subr.bf16.mxu0 0
    %292 = vmatpush1.bf16.msra.mxu0 %v273
    %293 = vmatprep.subr.bf16.mxu0 0
    %294 = vmatpush1.bf16.msra.mxu0 %v272
    %295 = vmatprep.subr.bf16.mxu0 0
    %296 = vmatpush2.bf16.msra.mxu0 0
    %297 = vmatprep.subr.bf16.mxu0 0
    %298 = vmatpush2.bf16.msra.mxu0 0
    %299 = vmatprep.subr.bf16.mxu0 0
    %300 = vmatpush2.bf16.msra.mxu0 0
    %301 = vmatprep.subr.bf16.mxu0 0
    %302 = vmatpush2.bf16.msra.mxu0 0
    %303 = vmatprep.subr.bf16.mxu0 0
    %304 = vmatpush2.bf16.msra.mxu0 0
    %305 = vmatprep.subr.bf16.mxu0 0
    %306 = vmatpush2.bf16.msra.mxu0 0
    %307 = vmatprep.subr.bf16.mxu0 0
    %308 = vmatpush2.bf16.msra.mxu0 0
    %309 = vmatprep.subr.bf16.mxu0 0
    %310 = vmatpush2.bf16.msra.mxu0 0
    %311 = vmatprep.mubr.bf16.mxu0 0
    %312 = vmatmul.mubr.bf16.gmra.mxu0 %v277
    %v313 = vpop.f32.mrf.mxu0
    %v314 = vadd.f32 %v259, %v313
    %v315 = vpop.f32.mrf.mxu0
    %v316 = vpop.f32.mrf.mxu0
    %v317 = vpop.f32.mrf.mxu0
    %318 = vdwg.mxu0
    %v319 = vadd.f32 %v314, %v143
    %v320 = vtanh.pop %v319
    %321 = vmatprep.subr.bf16.mxu0 0
    %322 = vmatpush1.bf16.msra.mxu0 0
    %323 = vmatprep.subr.bf16.mxu0 0
    %324 = vmatpush1.bf16.msra.mxu0 0
    %325 = vmatprep.subr.bf16.mxu0 0
    %326 = vmatpush1.bf16.msra.mxu0 0
    %327 = vmatprep.subr.bf16.mxu0 0
    %328 = vmatpush1.bf16.msra.mxu0 0
    %329 = vmatprep.subr.bf16.mxu0 0
    %330 = vmatpush1.bf16.msra.mxu0 0
    %331 = vmatprep.subr.bf16.mxu0 0
    %332 = vmatpush1.bf16.msra.mxu0 0
    %333 = vmatprep.subr.bf16.mxu0 0
    %334 = vmatpush1.bf16.msra.mxu0 %v158
    %335 = vmatprep.subr.bf16.mxu0 0
    %336 = vmatpush1.bf16.msra.mxu0 %v157
    %337 = vmatprep.subr.bf16.mxu0 0
    %338 = vmatpush2.bf16.msra.mxu0 0
    %339 = vmatprep.subr.bf16.mxu0 0
    %340 = vmatpush2.bf16.msra.mxu0 0
    %341 = vmatprep.subr.bf16.mxu0 0
    %342 = vmatpush2.bf16.msra.mxu0 0
    %343 = vmatprep.subr.bf16.mxu0 0
    %344 = vmatpush2.bf16.msra.mxu0 0
    %345 = vmatprep.subr.bf16.mxu0 0
    %346 = vmatpush2.bf16.msra.mxu0 0
    %347 = vmatprep.subr.bf16.mxu0 0
    %348 = vmatpush2.bf16.msra.mxu0 0
    %349 = vmatprep.subr.bf16.mxu0 0
    %350 = vmatpush2.bf16.msra.mxu0 0
    %351 = vmatprep.subr.bf16.mxu0 0
    %352 = vmatpush2.bf16.msra.mxu0 0
    %353 = vmatprep.mubr.bf16.mxu0 0
    %354 = vmatmul.mubr.bf16.gmra.mxu0 %v277
    %v355 = vpop.f32.mrf.mxu0
    %v356 = vadd.f32 0.0, %v355
    %v357 = vpop.f32.mrf.mxu0
    %v358 = vpop.f32.mrf.mxu0
    %v359 = vpop.f32.mrf.mxu0
    %360 = vdwg.mxu0
    %v362 = vrot.slane %v356, 4
    %v364 = vadd.f32 %v112, %v362
    %v365 = vtanh.pop %v364
    %v366 = vpack.c.bf16 %v365, %v365
    %v367 = vpack.c.bf16 %v320, %v320
    %v369 = vsel %vm161, %v367, 0
    %371 = vmatprep.subr.bf16.mxu0 0
    %372 = vmatpush1.bf16.msra.mxu0 0
    %373 = vmatprep.subr.bf16.mxu0 0
    %374 = vmatpush1.bf16.msra.mxu0 0
    %375 = vmatprep.subr.bf16.mxu0 0
    %376 = vmatpush1.bf16.msra.mxu0 0
    %377 = vmatprep.subr.bf16.mxu0 0
    %378 = vmatpush1.bf16.msra.mxu0 0
    %379 = vmatprep.subr.bf16.mxu0 0
    %380 = vmatpush1.bf16.msra.mxu0 0
    %381 = vmatprep.subr.bf16.mxu0 0
    %382 = vmatpush1.bf16.msra.mxu0 0
    %383 = vmatprep.subr.bf16.mxu0 0
    %384 = vmatpush1.bf16.msra.mxu0 %v218
    %385 = vmatprep.subr.bf16.mxu0 0
    %386 = vmatpush1.bf16.msra.mxu0 %v217
    %387 = vmatprep.subr.bf16.mxu0 0
    %388 = vmatpush2.bf16.msra.mxu0 0
    %389 = vmatprep.subr.bf16.mxu0 0
    %390 = vmatpush2.bf16.msra.mxu0 0
    %391 = vmatprep.subr.bf16.mxu0 0
    %392 = vmatpush2.bf16.msra.mxu0 0
    %393 = vmatprep.subr.bf16.mxu0 0
    %394 = vmatpush2.bf16.msra.mxu0 0
    %395 = vmatprep.subr.bf16.mxu0 0
    %396 = vmatpush2.bf16.msra.mxu0 0
    %397 = vmatprep.subr.bf16.mxu0 0
    %398 = vmatpush2.bf16.msra.mxu0 0
    %399 = vmatprep.subr.bf16.mxu0 0
    %400 = vmatpush2.bf16.msra.mxu0 0
    %401 = vmatprep.subr.bf16.mxu0 0
    %402 = vmatpush2.bf16.msra.mxu0 0
    %403 = vmatprep.mubr.bf16.mxu0 0
    %404 = vmatmul.mubr.bf16.gmra.mxu0 %v369
    %v405 = vpop.f32.mrf.mxu0
    %v406 = vadd.f32 0.0, %v405
    %v407 = vpop.f32.mrf.mxu0
    %v408 = vpop.f32.mrf.mxu0
    %v409 = vpop.f32.mrf.mxu0
    %410 = vdwg.mxu0
    %v412 = vrot.slane %v366, 2
    %v414 = vsel %vm161, %v412, 0
    %416 = vmatprep.subr.bf16.mxu0 0
    %417 = vmatpush1.bf16.msra.mxu0 0
    %418 = vmatprep.subr.bf16.mxu0 0
    %419 = vmatpush1.bf16.msra.mxu0 0
    %420 = vmatprep.subr.bf16.mxu0 0
    %421 = vmatpush1.bf16.msra.mxu0 0
    %422 = vmatprep.subr.bf16.mxu0 0
    %423 = vmatpush1.bf16.msra.mxu0 0
    %424 = vmatprep.subr.bf16.mxu0 0
    %425 = vmatpush1.bf16.msra.mxu0 0
    %426 = vmatprep.subr.bf16.mxu0 0
    %427 = vmatpush1.bf16.msra.mxu0 0
    %428 = vmatprep.subr.bf16.mxu0 0
    %429 = vmatpush1.bf16.msra.mxu0 %v273
    %430 = vmatprep.subr.bf16.mxu0 0
    %431 = vmatpush1.bf16.msra.mxu0 %v272
    %432 = vmatprep.subr.bf16.mxu0 0
    %433 = vmatpush2.bf16.msra.mxu0 0
    %434 = vmatprep.subr.bf16.mxu0 0
    %435 = vmatpush2.bf16.msra.mxu0 0
    %436 = vmatprep.subr.bf16.mxu0 0
    %437 = vmatpush2.bf16.msra.mxu0 0
    %438 = vmatprep.subr.bf16.mxu0 0
    %439 = vmatpush2.bf16.msra.mxu0 0
    %440 = vmatprep.subr.bf16.mxu0 0
    %441 = vmatpush2.bf16.msra.mxu0 0
    %442 = vmatprep.subr.bf16.mxu0 0
    %443 = vmatpush2.bf16.msra.mxu0 0
    %444 = vmatprep.subr.bf16.mxu0 0
    %445 = vmatpush2.bf16.msra.mxu0 0
    %446 = vmatprep.subr.bf16.mxu0 0
    %447 = vmatpush2.bf16.msra.mxu0 0
    %448 = vmatprep.mubr.bf16.mxu0 0
    %449 = vmatmul.mubr.bf16.gmra.mxu0 %v414
    %v450 = vpop.f32.mrf.mxu0
    %v451 = vadd.f32 %v406, %v450
    %v452 = vpop.f32.mrf.mxu0
    %v453 = vpop.f32.mrf.mxu0
    %v454 = vpop.f32.mrf.mxu0
    %455 = vdwg.mxu0
    %v456 = vadd.f32 %v451, %v143
    %v457 = vtanh.pop %v456
    %458 = vmatprep.subr.bf16.mxu0 0
    %459 = vmatpush1.bf16.msra.mxu0 0
    %460 = vmatprep.subr.bf16.mxu0 0
    %461 = vmatpush1.bf16.msra.mxu0 0
    %462 = vmatprep.subr.bf16.mxu0 0
    %463 = vmatpush1.bf16.msra.mxu0 0
    %464 = vmatprep.subr.bf16.mxu0 0
    %465 = vmatpush1.bf16.msra.mxu0 0
    %466 = vmatprep.subr.bf16.mxu0 0
    %467 = vmatpush1.bf16.msra.mxu0 0
    %468 = vmatprep.subr.bf16.mxu0 0
    %469 = vmatpush1.bf16.msra.mxu0 0
    %470 = vmatprep.subr.bf16.mxu0 0
    %471 = vmatpush1.bf16.msra.mxu0 %v158
    %472 = vmatprep.subr.bf16.mxu0 0
    %473 = vmatpush1.bf16.msra.mxu0 %v157
    %474 = vmatprep.subr.bf16.mxu0 0
    %475 = vmatpush2.bf16.msra.mxu0 0
    %476 = vmatprep.subr.bf16.mxu0 0
    %477 = vmatpush2.bf16.msra.mxu0 0
    %478 = vmatprep.subr.bf16.mxu0 0
    %479 = vmatpush2.bf16.msra.mxu0 0
    %480 = vmatprep.subr.bf16.mxu0 0
    %481 = vmatpush2.bf16.msra.mxu0 0
    %482 = vmatprep.subr.bf16.mxu0 0
    %483 = vmatpush2.bf16.msra.mxu0 0
    %484 = vmatprep.subr.bf16.mxu0 0
    %485 = vmatpush2.bf16.msra.mxu0 0
    %486 = vmatprep.subr.bf16.mxu0 0
    %487 = vmatpush2.bf16.msra.mxu0 0
    %488 = vmatprep.subr.bf16.mxu0 0
    %489 = vmatpush2.bf16.msra.mxu0 0
    %490 = vmatprep.mubr.bf16.mxu0 0
    %491 = vmatmul.mubr.bf16.gmra.mxu0 %v414
    %v492 = vpop.f32.mrf.mxu0
    %v493 = vadd.f32 0.0, %v492
    %v494 = vpop.f32.mrf.mxu0
    %v495 = vpop.f32.mrf.mxu0
    %v496 = vpop.f32.mrf.mxu0
    %497 = vdwg.mxu0
    %v498 = vadd.f32 %v115, %v493
    %v499 = vtanh.pop %v498
    %v500 = vpack.c.bf16 %v499, %v499
    %v501 = vpack.c.bf16 %v457, %v457
    %v503 = vsel %vm161, %v501, 0
    %505 = vmatprep.subr.bf16.mxu0 0
    %506 = vmatpush1.bf16.msra.mxu0 0
    %507 = vmatprep.subr.bf16.mxu0 0
    %508 = vmatpush1.bf16.msra.mxu0 0
    %509 = vmatprep.subr.bf16.mxu0 0
    %510 = vmatpush1.bf16.msra.mxu0 0
    %511 = vmatprep.subr.bf16.mxu0 0
    %512 = vmatpush1.bf16.msra.mxu0 0
    %513 = vmatprep.subr.bf16.mxu0 0
    %514 = vmatpush1.bf16.msra.mxu0 0
    %515 = vmatprep.subr.bf16.mxu0 0
    %516 = vmatpush1.bf16.msra.mxu0 0
    %517 = vmatprep.subr.bf16.mxu0 0
    %518 = vmatpush1.bf16.msra.mxu0 %v218
    %519 = vmatprep.subr.bf16.mxu0 0
    %520 = vmatpush1.bf16.msra.mxu0 %v217
    %521 = vmatprep.subr.bf16.mxu0 0
    %522 = vmatpush2.bf16.msra.mxu0 0
    %523 = vmatprep.subr.bf16.mxu0 0
    %524 = vmatpush2.bf16.msra.mxu0 0
    %525 = vmatprep.subr.bf16.mxu0 0
    %526 = vmatpush2.bf16.msra.mxu0 0
    %527 = vmatprep.subr.bf16.mxu0 0
    %528 = vmatpush2.bf16.msra.mxu0 0
    %529 = vmatprep.subr.bf16.mxu0 0
    %530 = vmatpush2.bf16.msra.mxu0 0
    %531 = vmatprep.subr.bf16.mxu0 0
    %532 = vmatpush2.bf16.msra.mxu0 0
    %533 = vmatprep.subr.bf16.mxu0 0
    %534 = vmatpush2.bf16.msra.mxu0 0
    %535 = vmatprep.subr.bf16.mxu0 0
    %536 = vmatpush2.bf16.msra.mxu0 0
    %537 = vmatprep.mubr.bf16.mxu0 0
    %538 = vmatmul.mubr.bf16.gmra.mxu0 %v503
    %v539 = vpop.f32.mrf.mxu0
    %v540 = vadd.f32 0.0, %v539
    %v541 = vpop.f32.mrf.mxu0
    %v542 = vpop.f32.mrf.mxu0
    %v543 = vpop.f32.mrf.mxu0
    %544 = vdwg.mxu0
    %v546 = vsel %vm161, %v500, 0
    %548 = vmatprep.subr.bf16.mxu0 0
    %549 = vmatpush1.bf16.msra.mxu0 0
    %550 = vmatprep.subr.bf16.mxu0 0
    %551 = vmatpush1.bf16.msra.mxu0 0
    %552 = vmatprep.subr.bf16.mxu0 0
    %553 = vmatpush1.bf16.msra.mxu0 0
    %554 = vmatprep.subr.bf16.mxu0 0
    %555 = vmatpush1.bf16.msra.mxu0 0
    %556 = vmatprep.subr.bf16.mxu0 0
    %557 = vmatpush1.bf16.msra.mxu0 0
    %558 = vmatprep.subr.bf16.mxu0 0
    %559 = vmatpush1.bf16.msra.mxu0 0
    %560 = vmatprep.subr.bf16.mxu0 0
    %561 = vmatpush1.bf16.msra.mxu0 %v273
    %562 = vmatprep.subr.bf16.mxu0 0
    %563 = vmatpush1.bf16.msra.mxu0 %v272
    %564 = vmatprep.subr.bf16.mxu0 0
    %565 = vmatpush2.bf16.msra.mxu0 0
    %566 = vmatprep.subr.bf16.mxu0 0
    %567 = vmatpush2.bf16.msra.mxu0 0
    %568 = vmatprep.subr.bf16.mxu0 0
    %569 = vmatpush2.bf16.msra.mxu0 0
    %570 = vmatprep.subr.bf16.mxu0 0
    %571 = vmatpush2.bf16.msra.mxu0 0
    %572 = vmatprep.subr.bf16.mxu0 0
    %573 = vmatpush2.bf16.msra.mxu0 0
    %574 = vmatprep.subr.bf16.mxu0 0
    %575 = vmatpush2.bf16.msra.mxu0 0
    %576 = vmatprep.subr.bf16.mxu0 0
    %577 = vmatpush2.bf16.msra.mxu0 0
    %578 = vmatprep.subr.bf16.mxu0 0
    %579 = vmatpush2.bf16.msra.mxu0 0
    %580 = vmatprep.mubr.bf16.mxu0 0
    %581 = vmatmul.mubr.bf16.gmra.mxu0 %v546
    %v582 = vpop.f32.mrf.mxu0
    %v583 = vadd.f32 %v540, %v582
    %v584 = vpop.f32.mrf.mxu0
    %v585 = vpop.f32.mrf.mxu0
    %v586 = vpop.f32.mrf.mxu0
    %587 = vdwg.mxu0
    %v588 = vadd.f32 %v583, %v143
    %v589 = vtanh.pop %v588
    %590 = vmatprep.subr.bf16.mxu0 0
    %591 = vmatpush1.bf16.msra.mxu0 0
    %592 = vmatprep.subr.bf16.mxu0 0
    %593 = vmatpush1.bf16.msra.mxu0 0
    %594 = vmatprep.subr.bf16.mxu0 0
    %595 = vmatpush1.bf16.msra.mxu0 0
    %596 = vmatprep.subr.bf16.mxu0 0
    %597 = vmatpush1.bf16.msra.mxu0 0
    %598 = vmatprep.subr.bf16.mxu0 0
    %599 = vmatpush1.bf16.msra.mxu0 0
    %600 = vmatprep.subr.bf16.mxu0 0
    %601 = vmatpush1.bf16.msra.mxu0 0
    %602 = vmatprep.subr.bf16.mxu0 0
    %603 = vmatpush1.bf16.msra.mxu0 %v158
    %604 = vmatprep.subr.bf16.mxu0 0
    %605 = vmatpush1.bf16.msra.mxu0 %v157
    %606 = vmatprep.subr.bf16.mxu0 0
    %607 = vmatpush2.bf16.msra.mxu0 0
    %608 = vmatprep.subr.bf16.mxu0 0
    %609 = vmatpush2.bf16.msra.mxu0 0
    %610 = vmatprep.subr.bf16.mxu0 0
    %611 = vmatpush2.bf16.msra.mxu0 0
    %612 = vmatprep.subr.bf16.mxu0 0
    %613 = vmatpush2.bf16.msra.mxu0 0
    %614 = vmatprep.subr.bf16.mxu0 0
    %615 = vmatpush2.bf16.msra.mxu0 0
    %616 = vmatprep.subr.bf16.mxu0 0
    %617 = vmatpush2.bf16.msra.mxu0 0
    %618 = vmatprep.subr.bf16.mxu0 0
    %619 = vmatpush2.bf16.msra.mxu0 0
    %620 = vmatprep.subr.bf16.mxu0 0
    %621 = vmatpush2.bf16.msra.mxu0 0
    %622 = vmatprep.mubr.bf16.mxu0 0
    %623 = vmatmul.mubr.bf16.gmra.mxu0 %v546
    %v624 = vpop.f32.mrf.mxu0
    %v625 = vadd.f32 0.0, %v624
    %v626 = vpop.f32.mrf.mxu0
    %v627 = vpop.f32.mrf.mxu0
    %v628 = vpop.f32.mrf.mxu0
    %629 = vdwg.mxu0
    %v631 = vrot.slane %v625, 4
    %v633 = vadd.f32 %v115, %v631
    %v634 = vtanh.pop %v633
    %v635 = vpack.c.bf16 %v634, %v634
    %v636 = vpack.c.bf16 %v589, %v589
    %v638 = vsel %vm161, %v636, 0
    %640 = vmatprep.subr.bf16.mxu0 0
    %641 = vmatpush1.bf16.msra.mxu0 0
    %642 = vmatprep.subr.bf16.mxu0 0
    %643 = vmatpush1.bf16.msra.mxu0 0
    %644 = vmatprep.subr.bf16.mxu0 0
    %645 = vmatpush1.bf16.msra.mxu0 0
    %646 = vmatprep.subr.bf16.mxu0 0
    %647 = vmatpush1.bf16.msra.mxu0 0
    %648 = vmatprep.subr.bf16.mxu0 0
    %649 = vmatpush1.bf16.msra.mxu0 0
    %650 = vmatprep.subr.bf16.mxu0 0
    %651 = vmatpush1.bf16.msra.mxu0 0
    %652 = vmatprep.subr.bf16.mxu0 0
    %653 = vmatpush1.bf16.msra.mxu0 %v218
    %654 = vmatprep.subr.bf16.mxu0 0
    %655 = vmatpush1.bf16.msra.mxu0 %v217
    %656 = vmatprep.subr.bf16.mxu0 0
    %657 = vmatpush2.bf16.msra.mxu0 0
    %658 = vmatprep.subr.bf16.mxu0 0
    %659 = vmatpush2.bf16.msra.mxu0 0
    %660 = vmatprep.subr.bf16.mxu0 0
    %661 = vmatpush2.bf16.msra.mxu0 0
    %662 = vmatprep.subr.bf16.mxu0 0
    %663 = vmatpush2.bf16.msra.mxu0 0
    %664 = vmatprep.subr.bf16.mxu0 0
    %665 = vmatpush2.bf16.msra.mxu0 0
    %666 = vmatprep.subr.bf16.mxu0 0
    %667 = vmatpush2.bf16.msra.mxu0 0
    %668 = vmatprep.subr.bf16.mxu0 0
    %669 = vmatpush2.bf16.msra.mxu0 0
    %670 = vmatprep.subr.bf16.mxu0 0
    %671 = vmatpush2.bf16.msra.mxu0 0
    %672 = vmatprep.mubr.bf16.mxu0 0
    %673 = vmatmul.mubr.bf16.gmra.mxu0 %v638
    %v674 = vpop.f32.mrf.mxu0
    %v675 = vadd.f32 0.0, %v674
    %v676 = vpop.f32.mrf.mxu0
    %v677 = vpop.f32.mrf.mxu0
    %v678 = vpop.f32.mrf.mxu0
    %679 = vdwg.mxu0
    %v681 = vrot.slane %v635, 2
    %v683 = vsel %vm161, %v681, 0
    %685 = vmatprep.subr.bf16.mxu0 0
    %686 = vmatpush1.bf16.msra.mxu0 0
    %687 = vmatprep.subr.bf16.mxu0 0
    %688 = vmatpush1.bf16.msra.mxu0 0
    %689 = vmatprep.subr.bf16.mxu0 0
    %690 = vmatpush1.bf16.msra.mxu0 0
    %691 = vmatprep.subr.bf16.mxu0 0
    %692 = vmatpush1.bf16.msra.mxu0 0
    %693 = vmatprep.subr.bf16.mxu0 0
    %694 = vmatpush1.bf16.msra.mxu0 0
    %695 = vmatprep.subr.bf16.mxu0 0
    %696 = vmatpush1.bf16.msra.mxu0 0
    %697 = vmatprep.subr.bf16.mxu0 0
    %698 = vmatpush1.bf16.msra.mxu0 %v273
    %699 = vmatprep.subr.bf16.mxu0 0
    %700 = vmatpush1.bf16.msra.mxu0 %v272
    %701 = vmatprep.subr.bf16.mxu0 0
    %702 = vmatpush2.bf16.msra.mxu0 0
    %703 = vmatprep.subr.bf16.mxu0 0
    %704 = vmatpush2.bf16.msra.mxu0 0
    %705 = vmatprep.subr.bf16.mxu0 0
    %706 = vmatpush2.bf16.msra.mxu0 0
    %707 = vmatprep.subr.bf16.mxu0 0
    %708 = vmatpush2.bf16.msra.mxu0 0
    %709 = vmatprep.subr.bf16.mxu0 0
    %710 = vmatpush2.bf16.msra.mxu0 0
    %711 = vmatprep.subr.bf16.mxu0 0
    %712 = vmatpush2.bf16.msra.mxu0 0
    %713 = vmatprep.subr.bf16.mxu0 0
    %714 = vmatpush2.bf16.msra.mxu0 0
    %715 = vmatprep.subr.bf16.mxu0 0
    %716 = vmatpush2.bf16.msra.mxu0 0
    %717 = vmatprep.mubr.bf16.mxu0 0
    %718 = vmatmul.mubr.bf16.gmra.mxu0 %v683
    %v719 = vpop.f32.mrf.mxu0
    %v720 = vadd.f32 %v675, %v719
    %v721 = vpop.f32.mrf.mxu0
    %v722 = vpop.f32.mrf.mxu0
    %v723 = vpop.f32.mrf.mxu0
    %724 = vdwg.mxu0
    %v725 = vadd.f32 %v720, %v143
    %v726 = vtanh.pop %v725
    %727 = vmatprep.subr.bf16.mxu0 0
    %728 = vmatpush1.bf16.msra.mxu0 0
    %729 = vmatprep.subr.bf16.mxu0 0
    %730 = vmatpush1.bf16.msra.mxu0 0
    %731 = vmatprep.subr.bf16.mxu0 0
    %732 = vmatpush1.bf16.msra.mxu0 0
    %733 = vmatprep.subr.bf16.mxu0 0
    %734 = vmatpush1.bf16.msra.mxu0 0
    %735 = vmatprep.subr.bf16.mxu0 0
    %736 = vmatpush1.bf16.msra.mxu0 0
    %737 = vmatprep.subr.bf16.mxu0 0
    %738 = vmatpush1.bf16.msra.mxu0 0
    %739 = vmatprep.subr.bf16.mxu0 0
    %740 = vmatpush1.bf16.msra.mxu0 %v158
    %741 = vmatprep.subr.bf16.mxu0 0
    %742 = vmatpush1.bf16.msra.mxu0 %v157
    %743 = vmatprep.subr.bf16.mxu0 0
    %744 = vmatpush2.bf16.msra.mxu0 0
    %745 = vmatprep.subr.bf16.mxu0 0
    %746 = vmatpush2.bf16.msra.mxu0 0
    %747 = vmatprep.subr.bf16.mxu0 0
    %748 = vmatpush2.bf16.msra.mxu0 0
    %749 = vmatprep.subr.bf16.mxu0 0
    %750 = vmatpush2.bf16.msra.mxu0 0
    %751 = vmatprep.subr.bf16.mxu0 0
    %752 = vmatpush2.bf16.msra.mxu0 0
    %753 = vmatprep.subr.bf16.mxu0 0
    %754 = vmatpush2.bf16.msra.mxu0 0
    %755 = vmatprep.subr.bf16.mxu0 0
    %756 = vmatpush2.bf16.msra.mxu0 0
    %757 = vmatprep.subr.bf16.mxu0 0
    %758 = vmatpush2.bf16.msra.mxu0 0
    %759 = vmatprep.mubr.bf16.mxu0 0
    %760 = vmatmul.mubr.bf16.gmra.mxu0 %v683
    %v761 = vpop.f32.mrf.mxu0
    %v762 = vadd.f32 0.0, %v761
    %v763 = vpop.f32.mrf.mxu0
    %v764 = vpop.f32.mrf.mxu0
    %v765 = vpop.f32.mrf.mxu0
    %766 = vdwg.mxu0
    %v767 = vadd.f32 %v120, %v762
    %v768 = vtanh.pop %v767
    %v769 = vpack.c.bf16 %v768, %v768
    %v770 = vpack.c.bf16 %v726, %v726
    %v772 = vsel %vm161, %v770, 0
    %774 = vmatprep.subr.bf16.mxu0 0
    %775 = vmatpush1.bf16.msra.mxu0 0
    %776 = vmatprep.subr.bf16.mxu0 0
    %777 = vmatpush1.bf16.msra.mxu0 0
    %778 = vmatprep.subr.bf16.mxu0 0
    %779 = vmatpush1.bf16.msra.mxu0 0
    %780 = vmatprep.subr.bf16.mxu0 0
    %781 = vmatpush1.bf16.msra.mxu0 0
    %782 = vmatprep.subr.bf16.mxu0 0
    %783 = vmatpush1.bf16.msra.mxu0 0
    %784 = vmatprep.subr.bf16.mxu0 0
    %785 = vmatpush1.bf16.msra.mxu0 0
    %786 = vmatprep.subr.bf16.mxu0 0
    %787 = vmatpush1.bf16.msra.mxu0 %v218
    %788 = vmatprep.subr.bf16.mxu0 0
    %789 = vmatpush1.bf16.msra.mxu0 %v217
    %790 = vmatprep.subr.bf16.mxu0 0
    %791 = vmatpush2.bf16.msra.mxu0 0
    %792 = vmatprep.subr.bf16.mxu0 0
    %793 = vmatpush2.bf16.msra.mxu0 0
    %794 = vmatprep.subr.bf16.mxu0 0
    %795 = vmatpush2.bf16.msra.mxu0 0
    %796 = vmatprep.subr.bf16.mxu0 0
    %797 = vmatpush2.bf16.msra.mxu0 0
    %798 = vmatprep.subr.bf16.mxu0 0
    %799 = vmatpush2.bf16.msra.mxu0 0
    %800 = vmatprep.subr.bf16.mxu0 0
    %801 = vmatpush2.bf16.msra.mxu0 0
    %802 = vmatprep.subr.bf16.mxu0 0
    %803 = vmatpush2.bf16.msra.mxu0 0
    %804 = vmatprep.subr.bf16.mxu0 0
    %805 = vmatpush2.bf16.msra.mxu0 0
    %806 = vmatprep.mubr.bf16.mxu0 0
    %807 = vmatmul.mubr.bf16.gmra.mxu0 %v772
    %v808 = vpop.f32.mrf.mxu0
    %v809 = vadd.f32 0.0, %v808
    %v810 = vpop.f32.mrf.mxu0
    %v811 = vpop.f32.mrf.mxu0
    %v812 = vpop.f32.mrf.mxu0
    %813 = vdwg.mxu0
    %v815 = vsel %vm161, %v769, 0
    %817 = vmatprep.subr.bf16.mxu0 0
    %818 = vmatpush1.bf16.msra.mxu0 0
    %819 = vmatprep.subr.bf16.mxu0 0
    %820 = vmatpush1.bf16.msra.mxu0 0
    %821 = vmatprep.subr.bf16.mxu0 0
    %822 = vmatpush1.bf16.msra.mxu0 0
    %823 = vmatprep.subr.bf16.mxu0 0
    %824 = vmatpush1.bf16.msra.mxu0 0
    %825 = vmatprep.subr.bf16.mxu0 0
    %826 = vmatpush1.bf16.msra.mxu0 0
    %827 = vmatprep.subr.bf16.mxu0 0
    %828 = vmatpush1.bf16.msra.mxu0 0
    %829 = vmatprep.subr.bf16.mxu0 0
    %830 = vmatpush1.bf16.msra.mxu0 %v273
    %831 = vmatprep.subr.bf16.mxu0 0
    %832 = vmatpush1.bf16.msra.mxu0 %v272
    %833 = vmatprep.subr.bf16.mxu0 0
    %834 = vmatpush2.bf16.msra.mxu0 0
    %835 = vmatprep.subr.bf16.mxu0 0
    %836 = vmatpush2.bf16.msra.mxu0 0
    %837 = vmatprep.subr.bf16.mxu0 0
    %838 = vmatpush2.bf16.msra.mxu0 0
    %839 = vmatprep.subr.bf16.mxu0 0
    %840 = vmatpush2.bf16.msra.mxu0 0
    %841 = vmatprep.subr.bf16.mxu0 0
    %842 = vmatpush2.bf16.msra.mxu0 0
    %843 = vmatprep.subr.bf16.mxu0 0
    %844 = vmatpush2.bf16.msra.mxu0 0
    %845 = vmatprep.subr.bf16.mxu0 0
    %846 = vmatpush2.bf16.msra.mxu0 0
    %847 = vmatprep.subr.bf16.mxu0 0
    %848 = vmatpush2.bf16.msra.mxu0 0
    %849 = vmatprep.mubr.bf16.mxu0 0
    %850 = vmatmul.mubr.bf16.gmra.mxu0 %v815
    %v851 = vpop.f32.mrf.mxu0
    %v852 = vadd.f32 %v809, %v851
    %v853 = vpop.f32.mrf.mxu0
    %v854 = vpop.f32.mrf.mxu0
    %v855 = vpop.f32.mrf.mxu0
    %856 = vdwg.mxu0
    %v857 = vadd.f32 %v852, %v143
    %v858 = vtanh.pop %v857
    %859 = vmatprep.subr.bf16.mxu0 0
    %860 = vmatpush1.bf16.msra.mxu0 0
    %861 = vmatprep.subr.bf16.mxu0 0
    %862 = vmatpush1.bf16.msra.mxu0 0
    %863 = vmatprep.subr.bf16.mxu0 0
    %864 = vmatpush1.bf16.msra.mxu0 0
    %865 = vmatprep.subr.bf16.mxu0 0
    %866 = vmatpush1.bf16.msra.mxu0 0
    %867 = vmatprep.subr.bf16.mxu0 0
    %868 = vmatpush1.bf16.msra.mxu0 0
    %869 = vmatprep.subr.bf16.mxu0 0
    %870 = vmatpush1.bf16.msra.mxu0 0
    %871 = vmatprep.subr.bf16.mxu0 0
    %872 = vmatpush1.bf16.msra.mxu0 %v158
    %873 = vmatprep.subr.bf16.mxu0 0
    %874 = vmatpush1.bf16.msra.mxu0 %v157
    %875 = vmatprep.subr.bf16.mxu0 0
    %876 = vmatpush2.bf16.msra.mxu0 0
    %877 = vmatprep.subr.bf16.mxu0 0
    %878 = vmatpush2.bf16.msra.mxu0 0
    %879 = vmatprep.subr.bf16.mxu0 0
    %880 = vmatpush2.bf16.msra.mxu0 0
    %881 = vmatprep.subr.bf16.mxu0 0
    %882 = vmatpush2.bf16.msra.mxu0 0
    %883 = vmatprep.subr.bf16.mxu0 0
    %884 = vmatpush2.bf16.msra.mxu0 0
    %885 = vmatprep.subr.bf16.mxu0 0
    %886 = vmatpush2.bf16.msra.mxu0 0
    %887 = vmatprep.subr.bf16.mxu0 0
    %888 = vmatpush2.bf16.msra.mxu0 0
    %889 = vmatprep.subr.bf16.mxu0 0
    %890 = vmatpush2.bf16.msra.mxu0 0
    %891 = vmatprep.mubr.bf16.mxu0 0
    %892 = vmatmul.mubr.bf16.gmra.mxu0 %v815
    %v893 = vpop.f32.mrf.mxu0
    %v894 = vadd.f32 0.0, %v893
    %v895 = vpop.f32.mrf.mxu0
    %v896 = vpop.f32.mrf.mxu0
    %v897 = vpop.f32.mrf.mxu0
    %898 = vdwg.mxu0
    %v900 = vrot.slane %v894, 4
    %v902 = vadd.f32 %v120, %v900
    %v903 = vtanh.pop %v902
    %v904 = vpack.c.bf16 %v903, %v903
    %v905 = vpack.c.bf16 %v858, %v858
    %v907 = vsel %vm161, %v905, 0
    %909 = vmatprep.subr.bf16.mxu0 0
    %910 = vmatpush1.bf16.msra.mxu0 0
    %911 = vmatprep.subr.bf16.mxu0 0
    %912 = vmatpush1.bf16.msra.mxu0 0
    %913 = vmatprep.subr.bf16.mxu0 0
    %914 = vmatpush1.bf16.msra.mxu0 0
    %915 = vmatprep.subr.bf16.mxu0 0
    %916 = vmatpush1.bf16.msra.mxu0 0
    %917 = vmatprep.subr.bf16.mxu0 0
    %918 = vmatpush1.bf16.msra.mxu0 0
    %919 = vmatprep.subr.bf16.mxu0 0
    %920 = vmatpush1.bf16.msra.mxu0 0
    %921 = vmatprep.subr.bf16.mxu0 0
    %922 = vmatpush1.bf16.msra.mxu0 %v218
    %923 = vmatprep.subr.bf16.mxu0 0
    %924 = vmatpush1.bf16.msra.mxu0 %v217
    %925 = vmatprep.subr.bf16.mxu0 0
    %926 = vmatpush2.bf16.msra.mxu0 0
    %927 = vmatprep.subr.bf16.mxu0 0
    %928 = vmatpush2.bf16.msra.mxu0 0
    %929 = vmatprep.subr.bf16.mxu0 0
    %930 = vmatpush2.bf16.msra.mxu0 0
    %931 = vmatprep.subr.bf16.mxu0 0
    %932 = vmatpush2.bf16.msra.mxu0 0
    %933 = vmatprep.subr.bf16.mxu0 0
    %934 = vmatpush2.bf16.msra.mxu0 0
    %935 = vmatprep.subr.bf16.mxu0 0
    %936 = vmatpush2.bf16.msra.mxu0 0
    %937 = vmatprep.subr.bf16.mxu0 0
    %938 = vmatpush2.bf16.msra.mxu0 0
    %939 = vmatprep.subr.bf16.mxu0 0
    %940 = vmatpush2.bf16.msra.mxu0 0
    %941 = vmatprep.mubr.bf16.mxu0 0
    %942 = vmatmul.mubr.bf16.gmra.mxu0 %v907
    %v943 = vpop.f32.mrf.mxu0
    %v944 = vadd.f32 0.0, %v943
    %v945 = vpop.f32.mrf.mxu0
    %v946 = vpop.f32.mrf.mxu0
    %v947 = vpop.f32.mrf.mxu0
    %948 = vdwg.mxu0
    %v950 = vrot.slane %v904, 2
    %v952 = vsel %vm161, %v950, 0
    %954 = vmatprep.subr.bf16.mxu0 0
    %955 = vmatpush1.bf16.msra.mxu0 0
    %956 = vmatprep.subr.bf16.mxu0 0
    %957 = vmatpush1.bf16.msra.mxu0 0
    %958 = vmatprep.subr.bf16.mxu0 0
    %959 = vmatpush1.bf16.msra.mxu0 0
    %960 = vmatprep.subr.bf16.mxu0 0
    %961 = vmatpush1.bf16.msra.mxu0 0
    %962 = vmatprep.subr.bf16.mxu0 0
    %963 = vmatpush1.bf16.msra.mxu0 0
    %964 = vmatprep.subr.bf16.mxu0 0
    %965 = vmatpush1.bf16.msra.mxu0 0
    %966 = vmatprep.subr.bf16.mxu0 0
    %967 = vmatpush1.bf16.msra.mxu0 %v273
    %968 = vmatprep.subr.bf16.mxu0 0
    %969 = vmatpush1.bf16.msra.mxu0 %v272
    %970 = vmatprep.subr.bf16.mxu0 0
    %971 = vmatpush2.bf16.msra.mxu0 0
    %972 = vmatprep.subr.bf16.mxu0 0
    %973 = vmatpush2.bf16.msra.mxu0 0
    %974 = vmatprep.subr.bf16.mxu0 0
    %975 = vmatpush2.bf16.msra.mxu0 0
    %976 = vmatprep.subr.bf16.mxu0 0
    %977 = vmatpush2.bf16.msra.mxu0 0
    %978 = vmatprep.subr.bf16.mxu0 0
    %979 = vmatpush2.bf16.msra.mxu0 0
    %980 = vmatprep.subr.bf16.mxu0 0
    %981 = vmatpush2.bf16.msra.mxu0 0
    %982 = vmatprep.subr.bf16.mxu0 0
    %983 = vmatpush2.bf16.msra.mxu0 0
    %984 = vmatprep.subr.bf16.mxu0 0
    %985 = vmatpush2.bf16.msra.mxu0 0
    %986 = vmatprep.mubr.bf16.mxu0 0
    %987 = vmatmul.mubr.bf16.gmra.mxu0 %v952
    %v988 = vpop.f32.mrf.mxu0
    %v989 = vadd.f32 %v944, %v988
    %v990 = vpop.f32.mrf.mxu0
    %v991 = vpop.f32.mrf.mxu0
    %v992 = vpop.f32.mrf.mxu0
    %993 = vdwg.mxu0
    %v994 = vadd.f32 %v989, %v143
    %v995 = vtanh.pop %v994
    %996 = vmatprep.subr.bf16.mxu0 0
    %997 = vmatpush1.bf16.msra.mxu0 0
    %998 = vmatprep.subr.bf16.mxu0 0
    %999 = vmatpush1.bf16.msra.mxu0 0
    %1000 = vmatprep.subr.bf16.mxu0 0
    %1001 = vmatpush1.bf16.msra.mxu0 0
    %1002 = vmatprep.subr.bf16.mxu0 0
    %1003 = vmatpush1.bf16.msra.mxu0 0
    %1004 = vmatprep.subr.bf16.mxu0 0
    %1005 = vmatpush1.bf16.msra.mxu0 0
    %1006 = vmatprep.subr.bf16.mxu0 0
    %1007 = vmatpush1.bf16.msra.mxu0 0
    %1008 = vmatprep.subr.bf16.mxu0 0
    %1009 = vmatpush1.bf16.msra.mxu0 %v158
    %1010 = vmatprep.subr.bf16.mxu0 0
    %1011 = vmatpush1.bf16.msra.mxu0 %v157
    %1012 = vmatprep.subr.bf16.mxu0 0
    %1013 = vmatpush2.bf16.msra.mxu0 0
    %1014 = vmatprep.subr.bf16.mxu0 0
    %1015 = vmatpush2.bf16.msra.mxu0 0
    %1016 = vmatprep.subr.bf16.mxu0 0
    %1017 = vmatpush2.bf16.msra.mxu0 0
    %1018 = vmatprep.subr.bf16.mxu0 0
    %1019 = vmatpush2.bf16.msra.mxu0 0
    %1020 = vmatprep.subr.bf16.mxu0 0
    %1021 = vmatpush2.bf16.msra.mxu0 0
    %1022 = vmatprep.subr.bf16.mxu0 0
    %1023 = vmatpush2.bf16.msra.mxu0 0
    %1024 = vmatprep.subr.bf16.mxu0 0
    %1025 = vmatpush2.bf16.msra.mxu0 0
    %1026 = vmatprep.subr.bf16.mxu0 0
    %1027 = vmatpush2.bf16.msra.mxu0 0
    %1028 = vmatprep.mubr.bf16.mxu0 0
    %1029 = vmatmul.mubr.bf16.gmra.mxu0 %v952
    %v1030 = vpop.f32.mrf.mxu0
    %v1031 = vadd.f32 0.0, %v1030
    %v1032 = vpop.f32.mrf.mxu0
    %v1033 = vpop.f32.mrf.mxu0
    %v1034 = vpop.f32.mrf.mxu0
    %1035 = vdwg.mxu0
    %v1036 = vadd.f32 %v123, %v1031
    %v1037 = vtanh.pop %v1036
    %v1038 = vpack.c.bf16 %v1037, %v1037
    %v1039 = vpack.c.bf16 %v995, %v995
    %v1041 = vsel %vm161, %v1039, 0
    %1043 = vmatprep.subr.bf16.mxu0 0
    %1044 = vmatpush1.bf16.msra.mxu0 0
    %1045 = vmatprep.subr.bf16.mxu0 0
    %1046 = vmatpush1.bf16.msra.mxu0 0
    %1047 = vmatprep.subr.bf16.mxu0 0
    %1048 = vmatpush1.bf16.msra.mxu0 0
    %1049 = vmatprep.subr.bf16.mxu0 0
    %1050 = vmatpush1.bf16.msra.mxu0 0
    %1051 = vmatprep.subr.bf16.mxu0 0
    %1052 = vmatpush1.bf16.msra.mxu0 0
    %1053 = vmatprep.subr.bf16.mxu0 0
    %1054 = vmatpush1.bf16.msra.mxu0 0
    %1055 = vmatprep.subr.bf16.mxu0 0
    %1056 = vmatpush1.bf16.msra.mxu0 %v218
    %1057 = vmatprep.subr.bf16.mxu0 0
    %1058 = vmatpush1.bf16.msra.mxu0 %v217
    %1059 = vmatprep.subr.bf16.mxu0 0
    %1060 = vmatpush2.bf16.msra.mxu0 0
    %1061 = vmatprep.subr.bf16.mxu0 0
    %1062 = vmatpush2.bf16.msra.mxu0 0
    %1063 = vmatprep.subr.bf16.mxu0 0
    %1064 = vmatpush2.bf16.msra.mxu0 0
    %1065 = vmatprep.subr.bf16.mxu0 0
    %1066 = vmatpush2.bf16.msra.mxu0 0
    %1067 = vmatprep.subr.bf16.mxu0 0
    %1068 = vmatpush2.bf16.msra.mxu0 0
    %1069 = vmatprep.subr.bf16.mxu0 0
    %1070 = vmatpush2.bf16.msra.mxu0 0
    %1071 = vmatprep.subr.bf16.mxu0 0
    %1072 = vmatpush2.bf16.msra.mxu0 0
    %1073 = vmatprep.subr.bf16.mxu0 0
    %1074 = vmatpush2.bf16.msra.mxu0 0
    %1075 = vmatprep.mubr.bf16.mxu0 0
    %1076 = vmatmul.mubr.bf16.gmra.mxu0 %v1041
    %v1077 = vpop.f32.mrf.mxu0
    %v1078 = vadd.f32 0.0, %v1077
    %v1079 = vpop.f32.mrf.mxu0
    %v1080 = vpop.f32.mrf.mxu0
    %v1081 = vpop.f32.mrf.mxu0
    %1082 = vdwg.mxu0
    %v1084 = vsel %vm161, %v1038, 0
    %1086 = vmatprep.subr.bf16.mxu0 0
    %1087 = vmatpush1.bf16.msra.mxu0 0
    %1088 = vmatprep.subr.bf16.mxu0 0
    %1089 = vmatpush1.bf16.msra.mxu0 0
    %1090 = vmatprep.subr.bf16.mxu0 0
    %1091 = vmatpush1.bf16.msra.mxu0 0
    %1092 = vmatprep.subr.bf16.mxu0 0
    %1093 = vmatpush1.bf16.msra.mxu0 0
    %1094 = vmatprep.subr.bf16.mxu0 0
    %1095 = vmatpush1.bf16.msra.mxu0 0
    %1096 = vmatprep.subr.bf16.mxu0 0
    %1097 = vmatpush1.bf16.msra.mxu0 0
    %1098 = vmatprep.subr.bf16.mxu0 0
    %1099 = vmatpush1.bf16.msra.mxu0 %v273
    %1100 = vmatprep.subr.bf16.mxu0 0
    %1101 = vmatpush1.bf16.msra.mxu0 %v272
    %1102 = vmatprep.subr.bf16.mxu0 0
    %1103 = vmatpush2.bf16.msra.mxu0 0
    %1104 = vmatprep.subr.bf16.mxu0 0
    %1105 = vmatpush2.bf16.msra.mxu0 0
    %1106 = vmatprep.subr.bf16.mxu0 0
    %1107 = vmatpush2.bf16.msra.mxu0 0
    %1108 = vmatprep.subr.bf16.mxu0 0
    %1109 = vmatpush2.bf16.msra.mxu0 0
    %1110 = vmatprep.subr.bf16.mxu0 0
    %1111 = vmatpush2.bf16.msra.mxu0 0
    %1112 = vmatprep.subr.bf16.mxu0 0
    %1113 = vmatpush2.bf16.msra.mxu0 0
    %1114 = vmatprep.subr.bf16.mxu0 0
    %1115 = vmatpush2.bf16.msra.mxu0 0
    %1116 = vmatprep.subr.bf16.mxu0 0
    %1117 = vmatpush2.bf16.msra.mxu0 0
    %1118 = vmatprep.mubr.bf16.mxu0 0
    %1119 = vmatmul.mubr.bf16.gmra.mxu0 %v1084
    %v1120 = vpop.f32.mrf.mxu0
    %v1121 = vadd.f32 %v1078, %v1120
    %v1122 = vpop.f32.mrf.mxu0
    %v1123 = vpop.f32.mrf.mxu0
    %v1124 = vpop.f32.mrf.mxu0
    %1125 = vdwg.mxu0
    %v1126 = vadd.f32 %v1121, %v143
    %v1127 = vtanh.pop %v1126
    %1128 = vmatprep.subr.bf16.mxu0 0
    %1129 = vmatpush1.bf16.msra.mxu0 0
    %1130 = vmatprep.subr.bf16.mxu0 0
    %1131 = vmatpush1.bf16.msra.mxu0 0
    %1132 = vmatprep.subr.bf16.mxu0 0
    %1133 = vmatpush1.bf16.msra.mxu0 0
    %1134 = vmatprep.subr.bf16.mxu0 0
    %1135 = vmatpush1.bf16.msra.mxu0 0
    %1136 = vmatprep.subr.bf16.mxu0 0
    %1137 = vmatpush1.bf16.msra.mxu0 0
    %1138 = vmatprep.subr.bf16.mxu0 0
    %1139 = vmatpush1.bf16.msra.mxu0 0
    %1140 = vmatprep.subr.bf16.mxu0 0
    %1141 = vmatpush1.bf16.msra.mxu0 %v158
    %1142 = vmatprep.subr.bf16.mxu0 0
    %1143 = vmatpush1.bf16.msra.mxu0 %v157
    %1144 = vmatprep.subr.bf16.mxu0 0
    %1145 = vmatpush2.bf16.msra.mxu0 0
    %1146 = vmatprep.subr.bf16.mxu0 0
    %1147 = vmatpush2.bf16.msra.mxu0 0
    %1148 = vmatprep.subr.bf16.mxu0 0
    %1149 = vmatpush2.bf16.msra.mxu0 0
    %1150 = vmatprep.subr.bf16.mxu0 0
    %1151 = vmatpush2.bf16.msra.mxu0 0
    %1152 = vmatprep.subr.bf16.mxu0 0
    %1153 = vmatpush2.bf16.msra.mxu0 0
    %1154 = vmatprep.subr.bf16.mxu0 0
    %1155 = vmatpush2.bf16.msra.mxu0 0
    %1156 = vmatprep.subr.bf16.mxu0 0
    %1157 = vmatpush2.bf16.msra.mxu0 0
    %1158 = vmatprep.subr.bf16.mxu0 0
    %1159 = vmatpush2.bf16.msra.mxu0 0
    %1160 = vmatprep.mubr.bf16.mxu0 0
    %1161 = vmatmul.mubr.bf16.gmra.mxu0 %v1084
    %v1162 = vpop.f32.mrf.mxu0
    %v1163 = vadd.f32 0.0, %v1162
    %v1164 = vpop.f32.mrf.mxu0
    %v1165 = vpop.f32.mrf.mxu0
    %v1166 = vpop.f32.mrf.mxu0
    %1167 = vdwg.mxu0
    %v1169 = vrot.slane %v1163, 4
    %v1171 = vadd.f32 %v123, %v1169
    %v1172 = vtanh.pop %v1171
    %v1173 = vpack.c.bf16 %v1172, %v1172
    %v1174 = vpack.c.bf16 %v1127, %v1127
    %v1176 = vsel %vm161, %v1174, 0
    %1178 = vmatprep.subr.bf16.mxu0 0
    %1179 = vmatpush1.bf16.msra.mxu0 0
    %1180 = vmatprep.subr.bf16.mxu0 0
    %1181 = vmatpush1.bf16.msra.mxu0 0
    %1182 = vmatprep.subr.bf16.mxu0 0
    %1183 = vmatpush1.bf16.msra.mxu0 0
    %1184 = vmatprep.subr.bf16.mxu0 0
    %1185 = vmatpush1.bf16.msra.mxu0 0
    %1186 = vmatprep.subr.bf16.mxu0 0
    %1187 = vmatpush1.bf16.msra.mxu0 0
    %1188 = vmatprep.subr.bf16.mxu0 0
    %1189 = vmatpush1.bf16.msra.mxu0 0
    %1190 = vmatprep.subr.bf16.mxu0 0
    %1191 = vmatpush1.bf16.msra.mxu0 %v218
    %1192 = vmatprep.subr.bf16.mxu0 0
    %1193 = vmatpush1.bf16.msra.mxu0 %v217
    %1194 = vmatprep.subr.bf16.mxu0 0
    %1195 = vmatpush2.bf16.msra.mxu0 0
    %1196 = vmatprep.subr.bf16.mxu0 0
    %1197 = vmatpush2.bf16.msra.mxu0 0
    %1198 = vmatprep.subr.bf16.mxu0 0
    %1199 = vmatpush2.bf16.msra.mxu0 0
    %1200 = vmatprep.subr.bf16.mxu0 0
    %1201 = vmatpush2.bf16.msra.mxu0 0
    %1202 = vmatprep.subr.bf16.mxu0 0
    %1203 = vmatpush2.bf16.msra.mxu0 0
    %1204 = vmatprep.subr.bf16.mxu0 0
    %1205 = vmatpush2.bf16.msra.mxu0 0
    %1206 = vmatprep.subr.bf16.mxu0 0
    %1207 = vmatpush2.bf16.msra.mxu0 0
    %1208 = vmatprep.subr.bf16.mxu0 0
    %1209 = vmatpush2.bf16.msra.mxu0 0
    %1210 = vmatprep.mubr.bf16.mxu0 0
    %1211 = vmatmul.mubr.bf16.gmra.mxu0 %v1176
    %v1212 = vpop.f32.mrf.mxu0
    %v1213 = vadd.f32 0.0, %v1212
    %v1214 = vpop.f32.mrf.mxu0
    %v1215 = vpop.f32.mrf.mxu0
    %v1216 = vpop.f32.mrf.mxu0
    %1217 = vdwg.mxu0
    %v1219 = vrot.slane %v1173, 2
    %v1221 = vsel %vm161, %v1219, 0
    %1223 = vmatprep.subr.bf16.mxu0 0
    %1224 = vmatpush1.bf16.msra.mxu0 0
    %1225 = vmatprep.subr.bf16.mxu0 0
    %1226 = vmatpush1.bf16.msra.mxu0 0
    %1227 = vmatprep.subr.bf16.mxu0 0
    %1228 = vmatpush1.bf16.msra.mxu0 0
    %1229 = vmatprep.subr.bf16.mxu0 0
    %1230 = vmatpush1.bf16.msra.mxu0 0
    %1231 = vmatprep.subr.bf16.mxu0 0
    %1232 = vmatpush1.bf16.msra.mxu0 0
    %1233 = vmatprep.subr.bf16.mxu0 0
    %1234 = vmatpush1.bf16.msra.mxu0 0
    %1235 = vmatprep.subr.bf16.mxu0 0
    %1236 = vmatpush1.bf16.msra.mxu0 %v273
    %1237 = vmatprep.subr.bf16.mxu0 0
    %1238 = vmatpush1.bf16.msra.mxu0 %v272
    %1239 = vmatprep.subr.bf16.mxu0 0
    %1240 = vmatpush2.bf16.msra.mxu0 0
    %1241 = vmatprep.subr.bf16.mxu0 0
    %1242 = vmatpush2.bf16.msra.mxu0 0
    %1243 = vmatprep.subr.bf16.mxu0 0
    %1244 = vmatpush2.bf16.msra.mxu0 0
    %1245 = vmatprep.subr.bf16.mxu0 0
    %1246 = vmatpush2.bf16.msra.mxu0 0
    %1247 = vmatprep.subr.bf16.mxu0 0
    %1248 = vmatpush2.bf16.msra.mxu0 0
    %1249 = vmatprep.subr.bf16.mxu0 0
    %1250 = vmatpush2.bf16.msra.mxu0 0
    %1251 = vmatprep.subr.bf16.mxu0 0
    %1252 = vmatpush2.bf16.msra.mxu0 0
    %1253 = vmatprep.subr.bf16.mxu0 0
    %1254 = vmatpush2.bf16.msra.mxu0 0
    %1255 = vmatprep.mubr.bf16.mxu0 0
    %1256 = vmatmul.mubr.bf16.gmra.mxu0 %v1221
    %v1257 = vpop.f32.mrf.mxu0
    %v1258 = vadd.f32 %v1213, %v1257
    %v1259 = vpop.f32.mrf.mxu0
    %v1260 = vpop.f32.mrf.mxu0
    %v1261 = vpop.f32.mrf.mxu0
    %1262 = vdwg.mxu0
    %v1263 = vadd.f32 %v1258, %v143
    %v1264 = vtanh.pop %v1263
    %vm1265 = vcmask 261124
    %1266 = vst.msk [vmem:[#allocation2 - $0x4] sm:$0xf0] %vm1265, %v1172
    %vm1267 = vcmask 257024
    %1268 = vst.msk [vmem:[%s146] sm:$0xf] %vm1267, %v1264
    // Predicated region
    $region46: #{bidirectional_rnn.1} parent=1 // pred_check
      %p1269 = pneg %p37
    $region47: #{bidirectional_rnn.1} parent=1 // pred_check_branch
      %1271 = sbr.rel (%p1269) target = $region49
    $region48: #{bidirectional_rnn.1} parent=1 // pred_region
      %v1272 = vpack.c.bf16 %v1264, %v1264
      %v1273 = vld [vmem:[%s7] sm:$0xf]
      %v1274 = vld [vmem:[%s7 + $0x4] sm:$0xf]
      %v1275 = vld [vmem:[%s7 + $0x8] sm:$0xf]
      %v1276 = vld [vmem:[%s7 + $0xc] sm:$0xf]
      %v1277 = vld [vmem:[%s8] sm:$0xf]
      %v1278 = vld [vmem:[%s8 + $0x4] sm:$0xf]
      %v1279 = vld [vmem:[%s8 + $0x8] sm:$0xf]
      %v1280 = vld [vmem:[%s8 + $0xc] sm:$0xf]
      %v1282 = vrot.slane %v1272, 1
      %v1287 = vunpack.c.l.b16 %v1277
      %v1288 = vunpack.c.l.b16 %v1278
      %v1289 = vunpack.c.l.b16 %v1279
      %v1290 = vunpack.c.l.b16 %v1280
      %v1291 = vpack.c.b16 %v1288, %v1287
      %v1292 = vpack.c.b16 %v1290, %v1289
      %v1296 = vsel %vm161, %v1282, 0
      %1298 = vmatprep.subr.bf16.mxu0 0
      %1299 = vmatpush1.bf16.msra.mxu0 0
      %1300 = vmatprep.subr.bf16.mxu0 0
      %1301 = vmatpush1.bf16.msra.mxu0 0
      %1302 = vmatprep.subr.bf16.mxu0 0
      %1303 = vmatpush1.bf16.msra.mxu0 0
      %1304 = vmatprep.subr.bf16.mxu0 0
      %1305 = vmatpush1.bf16.msra.mxu0 0
      %1306 = vmatprep.subr.bf16.mxu0 0
      %1307 = vmatpush1.bf16.msra.mxu0 0
      %1308 = vmatprep.subr.bf16.mxu0 0
      %1309 = vmatpush1.bf16.msra.mxu0 0
      %1310 = vmatprep.subr.bf16.mxu0 0
      %1311 = vmatpush1.bf16.msra.mxu0 %v1292
      %1312 = vmatprep.subr.bf16.mxu0 0
      %1313 = vmatpush1.bf16.msra.mxu0 %v1291
      %1314 = vmatprep.subr.bf16.mxu0 0
      %1315 = vmatpush2.bf16.msra.mxu0 0
      %1316 = vmatprep.subr.bf16.mxu0 0
      %1317 = vmatpush2.bf16.msra.mxu0 0
      %1318 = vmatprep.subr.bf16.mxu0 0
      %1319 = vmatpush2.bf16.msra.mxu0 0
      %1320 = vmatprep.subr.bf16.mxu0 0
      %1321 = vmatpush2.bf16.msra.mxu0 0
      %1322 = vmatprep.subr.bf16.mxu0 0
      %1323 = vmatpush2.bf16.msra.mxu0 0
      %1324 = vmatprep.subr.bf16.mxu0 0
      %1325 = vmatpush2.bf16.msra.mxu0 0
      %1326 = vmatprep.subr.bf16.mxu0 0
      %1327 = vmatpush2.bf16.msra.mxu0 0
      %1328 = vmatprep.subr.bf16.mxu0 0
      %1329 = vmatpush2.bf16.msra.mxu0 0
      %1330 = vmatprep.mubr.bf16.mxu0 0
      %1331 = vmatmul.mubr.bf16.gmra.mxu0 %v1296
      %v1332 = vpop.f32.mrf.mxu0
      %v1333 = vadd.f32 0.0, %v1332
      %v1334 = vpop.f32.mrf.mxu0
      %v1335 = vpop.f32.mrf.mxu0
      %v1336 = vpop.f32.mrf.mxu0
      %1337 = vdwg.mxu0
      %v1342 = vunpack.c.l.b16 %v1273
      %v1343 = vunpack.c.l.b16 %v1274
      %v1344 = vunpack.c.l.b16 %v1275
      %v1345 = vunpack.c.l.b16 %v1276
      %v1346 = vpack.c.b16 %v1343, %v1342
      %v1347 = vpack.c.b16 %v1345, %v1344
      %v1351 = vsel %vm161, %v1272, 0
      %1353 = vmatprep.subr.bf16.mxu0 0
      %1354 = vmatpush1.bf16.msra.mxu0 0
      %1355 = vmatprep.subr.bf16.mxu0 0
      %1356 = vmatpush1.bf16.msra.mxu0 0
      %1357 = vmatprep.subr.bf16.mxu0 0
      %1358 = vmatpush1.bf16.msra.mxu0 0
      %1359 = vmatprep.subr.bf16.mxu0 0
      %1360 = vmatpush1.bf16.msra.mxu0 0
      %1361 = vmatprep.subr.bf16.mxu0 0
      %1362 = vmatpush1.bf16.msra.mxu0 0
      %1363 = vmatprep.subr.bf16.mxu0 0
      %1364 = vmatpush1.bf16.msra.mxu0 0
      %1365 = vmatprep.subr.bf16.mxu0 0
      %1366 = vmatpush1.bf16.msra.mxu0 %v1347
      %1367 = vmatprep.subr.bf16.mxu0 0
      %1368 = vmatpush1.bf16.msra.mxu0 %v1346
      %1369 = vmatprep.subr.bf16.mxu0 0
      %1370 = vmatpush2.bf16.msra.mxu0 0
      %1371 = vmatprep.subr.bf16.mxu0 0
      %1372 = vmatpush2.bf16.msra.mxu0 0
      %1373 = vmatprep.subr.bf16.mxu0 0
      %1374 = vmatpush2.bf16.msra.mxu0 0
      %1375 = vmatprep.subr.bf16.mxu0 0
      %1376 = vmatpush2.bf16.msra.mxu0 0
      %1377 = vmatprep.subr.bf16.mxu0 0
      %1378 = vmatpush2.bf16.msra.mxu0 0
      %1379 = vmatprep.subr.bf16.mxu0 0
      %1380 = vmatpush2.bf16.msra.mxu0 0
      %1381 = vmatprep.subr.bf16.mxu0 0
      %1382 = vmatpush2.bf16.msra.mxu0 0
      %1383 = vmatprep.subr.bf16.mxu0 0
      %1384 = vmatpush2.bf16.msra.mxu0 0
      %1385 = vmatprep.mubr.bf16.mxu0 0
      %1386 = vmatmul.mubr.bf16.gmra.mxu0 %v1351
      %v1387 = vpop.f32.mrf.mxu0
      %v1388 = vadd.f32 %v1333, %v1387
      %v1389 = vpop.f32.mrf.mxu0
      %v1390 = vpop.f32.mrf.mxu0
      %v1391 = vpop.f32.mrf.mxu0
      %1392 = vdwg.mxu0
      %v1393 = vld [vmem:[%s9] sm:$0x1]
      %v1395 = vlaneseq
      %v1396 = vshrl.u32 %v1395, 7
      %v1397 = vsub.s32 0, %v1396
      %v1398 = vrot.slane %v1393, %v1397
      %v1400 = vadd.f32 %v1388, %v1398
      %vm1401 = vcmask 123904
      %1402 = vst.msk [vmem:[#allocation3] sm:$0x3] %vm1401, %v1400
    $region49: #{bidirectional_rnn.1} parent=1 // pred_fallthru
      _
    // Predicated region
    $region50: #{bidirectional_rnn.1} parent=1 // pred_check
      _
    $region51: #{bidirectional_rnn.1} parent=1 // pred_check_branch
      %1404 = sbr.rel (0) target = $region53
    $region52: #{bidirectional_rnn.1} parent=1 // pred_region
      %s1406 = ssub.s32 32, 32
      %1407 = vsyncadd [#allocation4], %s1406
      %s1409 = sshll.u32 [#allocation3], 4
      %s1410 = int_to_ptr.vmem [resolvable:$true] %s1409
      %1412 = dma.vmem_to_hbm [thread:$0]  %s1410, 32, %s10, [#allocation4]
    $region53: #{bidirectional_rnn.1} parent=1 // pred_fallthru
      _
    // Predicated region
    $region54: #{bidirectional_rnn.1} parent=1 // pred_check
      _
    $region55: #{bidirectional_rnn.1} parent=1 // pred_check_branch
      %1414 = sbr.rel (0) target = $region57
    $region56: #{bidirectional_rnn.1} parent=1 // pred_region
      %1415 = dma.done [#allocation4], 32
    $region57: #{bidirectional_rnn.1} parent=1 // pred_fallthru
      _
    %1416 = vsyncpa [#allocation4], 1

</llo_original>
